<compile_context>
chip_gen: v6e
topology: v6e:2x2x1
jax: 0.10.0
libtpu: 0.0.40
codegen_flags: <defaults>
</compile_context>

<pallas_src>
import functools

import jax
import jax.numpy as jnp
from jax import lax
from jax.experimental import pallas as pl
from jax.experimental.pallas import tpu as pltpu


# --------------------------------- kernel ----------------------------------
def upsample_conv_bn_prelu_kernel(x_ref, w_ref, p_ref, o_ref, im_ref, *, H, W):
    # x_ref : (1, Cin, H*W)        bf16   input image, NCHW flattened
    # w_ref : (2*Cout, 12*Cin)     bf16   BN-folded, phase-packed conv weights
    # p_ref : (2*Cout, 2)          f32    col 0 = folded bias, col 1 = alpha
    # o_ref : (1, 2, 2*Cout, H*W)  f32    output phases [r, s*Cout+c, i*W+j]
    # im_ref: (12*Cin, H*W)        f32    im2col scratch
    HW = H * W
    Cin = x_ref.shape[1]

    x = x_ref[0].astype(jnp.float32)                      # (Cin, HW), lane-dense

    pid = lax.broadcasted_iota(jnp.int32, (1, HW), 1)     # flat pixel index
    if (W & (W - 1)) == 0:                                # power-of-two fast path
        row = pid >> (W.bit_length() - 1)
        col = pid & (W - 1)
    else:
        row = pid // W
        col = pid % W

    def lroll(a, k):
        # out[:, p] = a[:, p - k]  (cyclic), lane-axis XLU rotate
        return pltpu.roll(a, k % HW, 1)

    # ---- bilinear 2x upsample (align_corners=False), polyphase, edge-clamped
    prev_r = jnp.where(row == 0,     x, lroll(x,  W))     # x[i-1, j]
    next_r = jnp.where(row == H - 1, x, lroll(x, -W))     # x[i+1, j]
    a_h = (0.75 * x + 0.25 * prev_r,                      # even upsampled rows
           0.75 * x + 0.25 * next_r)                      # odd  upsampled rows

    P = []
    for a in a_h:
        prev_c = jnp.where(col == 0,     a, lroll(a,  1))
        next_c = jnp.where(col == W - 1, a, lroll(a, -1))
        P.append((0.75 * a + 0.25 * prev_c,               # even upsampled cols
                  0.75 * a + 0.25 * next_c))              # odd  upsampled cols

    def tap(qh, ah, qw, aw):
        # zero-padded shift of phase image: out[i, j] = P[qh][qw][i+ah, j+aw]
        img = P[qh][qw]
        if ah == 0 and aw == 0:
            return img
        shifted = lroll(img, -(ah * W + aw))
        valid = ((row + ah >= 0) & (row + ah <= H - 1) &
                 (col + aw >= 0) & (col + aw <= W - 1))
        return jnp.where(valid, shifted, 0.0)

    w = w_ref[...]                                        # (2*Cout, 12*Cin) bf16
    bias = p_ref[...][:, 0:1]                             # (2*Cout, 1) f32
    alpha = p_ref[...][:, 1:2]                            # (2*Cout, 1) f32

    # ---- one im2col matmul per output row-parity r (both col phases fused)
    for r in range(2):
        blk = 0
        for dh in range(3):
            uh = r + dh - 1
            ah, qh = uh >> 1, uh & 1                      # uh = 2*ah + qh
            for uw in (-1, 0, 1, 2):                      # column variants
                aw, qw = uw >> 1, uw & 1
                im_ref[pl.ds(blk * Cin, Cin), :] = tap(qh, ah, qw, aw)
                blk += 1
        y = jnp.dot(w, im_ref[...].astype(jnp.bfloat16),
                    preferred_element_type=jnp.float32)   # (2*Cout, HW)
        y = y + bias                                      # conv bias + BN (folded)
        y = jnp.where(y > 0, y, alpha * y)                # PReLU
        o_ref[0, r] = y.astype(o_ref.dtype)


# --------------------------------- wrapper ----------------------------------
def upsample_block(x_nchw, w_oihw, bias, gamma, beta, running_mean,
                   running_var, prelu_alpha, *, eps=1e-5):
    N, Cin, H, W = x_nchw.shape
    Cout = w_oihw.shape[0]
    HW = H * W

    # ---- fold BatchNorm2d (eval) + conv bias into the weights (f32 math)
    inv = lax.rsqrt(running_var.astype(jnp.float32) + eps)
    bn_scale = gamma.astype(jnp.float32) * inv                       # (Cout,)
    bn_shift = beta.astype(jnp.float32) - running_mean.astype(jnp.float32) * bn_scale
    b_fold = bias.astype(jnp.float32) * bn_scale + bn_shift          # (Cout,)

    w_f = w_oihw.astype(jnp.float32) * bn_scale[:, None, None, None]  # (Cout,Cin,3,3)
    base = jnp.transpose(w_f, (0, 2, 3, 1))                          # (Cout,3dh,3dw,Cin)
    z = jnp.zeros((Cout, 3, 1, Cin), jnp.float32)
    w_s0 = jnp.concatenate([base, z], axis=2)      # column variant cv = dw     (s=0)
    w_s1 = jnp.concatenate([z, base], axis=2)      # column variant cv = dw + 1 (s=1)
    wmat = jnp.stack([w_s0, w_s1], axis=0).reshape(2 * Cout, 12 * Cin)
    wmat = wmat.astype(jnp.bfloat16)

    # packed small params: col 0 = folded bias, col 1 = PReLU alpha (per channel)
    alpha_vec = jnp.broadcast_to(
        jnp.asarray(prelu_alpha, jnp.float32).reshape(-1), (Cout,))
    params = jnp.stack([jnp.tile(b_fold, 2), jnp.tile(alpha_vec, 2)], axis=1)

    x_flat = x_nchw.reshape(N, Cin, HW).astype(jnp.bfloat16)         # no transpose

    kernel = functools.partial(upsample_conv_bn_prelu_kernel, H=H, W=W)
    phases = pl.pallas_call(
        kernel,
        out_shape=jax.ShapeDtypeStruct((N, 2, 2 * Cout, HW), jnp.float32),
        grid=(N,),
        in_specs=[
            pl.BlockSpec((1, Cin, HW), lambda n: (n, 0, 0)),
            pl.BlockSpec((2 * Cout, 12 * Cin), lambda n: (0, 0)),
            pl.BlockSpec((2 * Cout, 2), lambda n: (0, 0)),
        ],
        out_specs=pl.BlockSpec((1, 2, 2 * Cout, HW), lambda n: (n, 0, 0, 0)),
        scratch_shapes=[pltpu.VMEM((12 * Cin, HW), jnp.float32)],
        compiler_params=pltpu.CompilerParams(
            dimension_semantics=("parallel",),
            vmem_limit_bytes=32 * 1024 * 1024),
    )(x_flat, wmat, params)

    # single boundary relayout straight to NCHW:
    # phases[n, r, s*Cout+c, i*W+j] -> out[n, c, 2i+r, 2j+s]
    out = phases.reshape(N, 2, 2, Cout, H, W)
    out = jnp.transpose(out, (0, 3, 4, 1, 5, 2))
    return out.reshape(N, Cout, 2 * H, 2 * W)


# ----------------------------- plain-JAX reference ---------------------------
def _torch_bilinear_2x(x_nhwc):
    N, H, W, C = x_nhwc.shape

    def idx_and_frac(size):
        d = jnp.arange(2 * size, dtype=jnp.float32)
        src = jnp.clip((d + 0.5) * 0.5 - 0.5, 0.0, size - 1.0)
        i0 = jnp.floor(src).astype(jnp.int32)
        i1 = jnp.minimum(i0 + 1, size - 1)
        return i0, i1, src - i0.astype(jnp.float32)

    h0, h1, fh = idx_and_frac(H)
    w0, w1, fw = idx_and_frac(W)
    xh = (x_nhwc[:, h0] * (1 - fh)[None, :, None, None]
          + x_nhwc[:, h1] * fh[None, :, None, None])
    return (xh[:, :, w0] * (1 - fw)[None, None, :, None]
            + xh[:, :, w1] * fw[None, None, :, None])


def _reference(x_nchw, w_oihw, bias, gamma, beta, mean, var, alpha, eps):
    x = jnp.transpose(x_nchw, (0, 2, 3, 1)).astype(jnp.float32)
    p = _torch_bilinear_2x(x)
    w = jnp.transpose(w_oihw, (2, 3, 1, 0)).astype(jnp.float32)
    y = lax.conv_general_dilated(
        p, w, window_strides=(1, 1), padding="SAME",
        dimension_numbers=("NHWC", "HWIO", "NHWC"),
        precision=lax.Precision.HIGHEST)
    y = y + bias
    y = (y - mean) * lax.rsqrt(var + eps) * gamma + beta
    y = jnp.where(y > 0, y, alpha * y)
    return jnp.transpose(y, (0, 3, 1, 2))


# ------------------------------------ main -----------------------------------
if __name__ == "__main__":
    key = jax.random.PRNGKey(0)
    k1, k2, k3 = jax.random.split(key, 3)

    N, Cin, H, W, Cout = 2, 4, 16, 16, 8
    x = jax.random.normal(k1, (N, Cin, H, W), jnp.float32)
    conv_w = 0.1 * jax.random.normal(k2, (Cout, Cin, 3, 3), jnp.float32)
    conv_b = 0.1 * jax.random.normal(k3, (Cout,), jnp.float32)
    gamma = 0.5 + 0.1 * jnp.arange(Cout, dtype=jnp.float32)
    beta = 0.05 * jnp.arange(Cout, dtype=jnp.float32)
    running_mean = 0.02 * jnp.arange(Cout, dtype=jnp.float32)
    running_var = 1.0 + 0.05 * jnp.arange(Cout, dtype=jnp.float32)
    prelu_alpha = jnp.float32(0.25)   # nn.PReLU() default: 1 shared parameter

    out = upsample_block(x, conv_w, conv_b, gamma, beta, running_mean,
                         running_var, prelu_alpha)
    out = jax.block_until_ready(out)

    ref = _reference(x, conv_w, conv_b, gamma, beta, running_mean,
                     running_var, prelu_alpha, 1e-5)
    assert out.shape == (N, Cout, 2 * H, 2 * W), out.shape
    max_err = float(jnp.max(jnp.abs(out - ref)))
    assert max_err < 5e-2, f"max abs error too large: {max_err}"
    print("KERNEL_OK")
</pallas_src>

<mosaic_0001>
module attributes {stable_mosaic.version = 11 : i64} {
  func.func @upsample_conv_bn_prelu_kernel(%arg0: i32, %arg1: memref<1x4x256xbf16, #tpu.memory_space<vmem>>, %arg2: memref<16x48xbf16, #tpu.memory_space<vmem>>, %arg3: memref<16x2xf32, #tpu.memory_space<vmem>>, %arg4: memref<1x2x16x256xf32, #tpu.memory_space<vmem>>, %arg5: memref<48x256xf32, #tpu.memory_space<vmem>>) attributes {dimension_semantics = [#tpu.dimension_semantics<parallel>], iteration_bounds = array<i64: 2>, scalar_prefetch = 0 : i64, scratch_operands = 1 : i64, tpu.core_type = #tpu.core_type<tc>, window_params = [{transform_indices = @transform_0, window_bounds = array<i64: 1, 4, 256>}, {pipeline_mode = #tpu.pipeline_mode<synchronous>, transform_indices = @transform_1, window_bounds = array<i64: 16, 48>}, {pipeline_mode = #tpu.pipeline_mode<synchronous>, transform_indices = @transform_2, window_bounds = array<i64: 16, 2>}, {transform_indices = @transform_3, window_bounds = array<i64: 1, 2, 16, 256>}]} {
    %c0 = arith.constant 0 : index
    %c0_0 = arith.constant 0 : index
    %c0_1 = arith.constant 0 : index
    %0 = vector.load %arg1[%c0, %c0_0, %c0_1] : memref<1x4x256xbf16, #tpu.memory_space<vmem>>, vector<1x4x256xbf16>
    %1 = vector.shape_cast %0 : vector<1x4x256xbf16> to vector<4x256xbf16>
    %2 = arith.extf %1 : vector<4x256xbf16> to vector<4x256xf32>
    %3 = tpu.iota {dimensions = array<i32: 1>} : vector<1x256xi32>
    %c4_i32 = arith.constant 4 : i32
    %4 = vector.broadcast %c4_i32 : i32 to vector<1x256xi32>
    %5 = arith.shrsi %3, %4 : vector<1x256xi32>
    %c15_i32 = arith.constant 15 : i32
    %6 = vector.broadcast %c15_i32 : i32 to vector<1x256xi32>
    %7 = arith.andi %3, %6 : vector<1x256xi32>
    %c0_i32 = arith.constant 0 : i32
    %8 = vector.broadcast %c0_i32 : i32 to vector<1x256xi32>
    %9 = arith.cmpi eq, %5, %8 : vector<1x256xi32>
    %c16_i32 = arith.constant 16 : i32
    %10 = tpu.dynamic_rotate %2 by %c16_i32 dim 1 : vector<4x256xf32>, i32 -> vector<4x256xf32>
    %11 = vector.shape_cast %9 : vector<1x256xi1> to vector<1x256xi1>
    %12 = vector.broadcast %11 : vector<1x256xi1> to vector<4x256xi1>
    %13 = arith.select %12, %2, %10 : vector<4x256xi1>, vector<4x256xf32>
    %c15_i32_2 = arith.constant 15 : i32
    %14 = vector.broadcast %c15_i32_2 : i32 to vector<1x256xi32>
    %15 = arith.cmpi eq, %5, %14 : vector<1x256xi32>
    %c240_i32 = arith.constant 240 : i32
    %16 = tpu.dynamic_rotate %2 by %c240_i32 dim 1 : vector<4x256xf32>, i32 -> vector<4x256xf32>
    %17 = vector.shape_cast %15 : vector<1x256xi1> to vector<1x256xi1>
    %18 = vector.broadcast %17 : vector<1x256xi1> to vector<4x256xi1>
    %19 = arith.select %18, %2, %16 : vector<4x256xi1>, vector<4x256xf32>
    %cst = arith.constant 7.500000e-01 : f32
    %20 = vector.broadcast %cst : f32 to vector<4x256xf32>
    %21 = arith.mulf %20, %2 : vector<4x256xf32>
    %cst_3 = arith.constant 2.500000e-01 : f32
    %22 = vector.broadcast %cst_3 : f32 to vector<4x256xf32>
    %23 = arith.mulf %22, %13 : vector<4x256xf32>
    %24 = arith.addf %21, %23 : vector<4x256xf32>
    %cst_4 = arith.constant 7.500000e-01 : f32
    %25 = vector.broadcast %cst_4 : f32 to vector<4x256xf32>
    %26 = arith.mulf %25, %2 : vector<4x256xf32>
    %cst_5 = arith.constant 2.500000e-01 : f32
    %27 = vector.broadcast %cst_5 : f32 to vector<4x256xf32>
    %28 = arith.mulf %27, %19 : vector<4x256xf32>
    %29 = arith.addf %26, %28 : vector<4x256xf32>
    %c0_i32_6 = arith.constant 0 : i32
    %30 = vector.broadcast %c0_i32_6 : i32 to vector<1x256xi32>
    %31 = arith.cmpi eq, %7, %30 : vector<1x256xi32>
    %c1_i32 = arith.constant 1 : i32
    %32 = tpu.dynamic_rotate %24 by %c1_i32 dim 1 : vector<4x256xf32>, i32 -> vector<4x256xf32>
    %33 = vector.shape_cast %31 : vector<1x256xi1> to vector<1x256xi1>
    %34 = vector.broadcast %33 : vector<1x256xi1> to vector<4x256xi1>
    %35 = arith.select %34, %24, %32 : vector<4x256xi1>, vector<4x256xf32>
    %c15_i32_7 = arith.constant 15 : i32
    %36 = vector.broadcast %c15_i32_7 : i32 to vector<1x256xi32>
    %37 = arith.cmpi eq, %7, %36 : vector<1x256xi32>
    %c255_i32 = arith.constant 255 : i32
    %38 = tpu.dynamic_rotate %24 by %c255_i32 dim 1 : vector<4x256xf32>, i32 -> vector<4x256xf32>
    %39 = vector.shape_cast %37 : vector<1x256xi1> to vector<1x256xi1>
    %40 = vector.broadcast %39 : vector<1x256xi1> to vector<4x256xi1>
    %41 = arith.select %40, %24, %38 : vector<4x256xi1>, vector<4x256xf32>
    %cst_8 = arith.constant 7.500000e-01 : f32
    %42 = vector.broadcast %cst_8 : f32 to vector<4x256xf32>
    %43 = arith.mulf %42, %24 : vector<4x256xf32>
    %cst_9 = arith.constant 2.500000e-01 : f32
    %44 = vector.broadcast %cst_9 : f32 to vector<4x256xf32>
    %45 = arith.mulf %44, %35 : vector<4x256xf32>
    %46 = arith.addf %43, %45 : vector<4x256xf32>
    %cst_10 = arith.constant 7.500000e-01 : f32
    %47 = vector.broadcast %cst_10 : f32 to vector<4x256xf32>
    %48 = arith.mulf %47, %24 : vector<4x256xf32>
    %cst_11 = arith.constant 2.500000e-01 : f32
    %49 = vector.broadcast %cst_11 : f32 to vector<4x256xf32>
    %50 = arith.mulf %49, %41 : vector<4x256xf32>
    %51 = arith.addf %48, %50 : vector<4x256xf32>
    %c0_i32_12 = arith.constant 0 : i32
    %52 = vector.broadcast %c0_i32_12 : i32 to vector<1x256xi32>
    %53 = arith.cmpi eq, %7, %52 : vector<1x256xi32>
    %c1_i32_13 = arith.constant 1 : i32
    %54 = tpu.dynamic_rotate %29 by %c1_i32_13 dim 1 : vector<4x256xf32>, i32 -> vector<4x256xf32>
    %55 = vector.shape_cast %53 : vector<1x256xi1> to vector<1x256xi1>
    %56 = vector.broadcast %55 : vector<1x256xi1> to vector<4x256xi1>
    %57 = arith.select %56, %29, %54 : vector<4x256xi1>, vector<4x256xf32>
    %c15_i32_14 = arith.constant 15 : i32
    %58 = vector.broadcast %c15_i32_14 : i32 to vector<1x256xi32>
    %59 = arith.cmpi eq, %7, %58 : vector<1x256xi32>
    %c255_i32_15 = arith.constant 255 : i32
    %60 = tpu.dynamic_rotate %29 by %c255_i32_15 dim 1 : vector<4x256xf32>, i32 -> vector<4x256xf32>
    %61 = vector.shape_cast %59 : vector<1x256xi1> to vector<1x256xi1>
    %62 = vector.broadcast %61 : vector<1x256xi1> to vector<4x256xi1>
    %63 = arith.select %62, %29, %60 : vector<4x256xi1>, vector<4x256xf32>
    %cst_16 = arith.constant 7.500000e-01 : f32
    %64 = vector.broadcast %cst_16 : f32 to vector<4x256xf32>
    %65 = arith.mulf %64, %29 : vector<4x256xf32>
    %cst_17 = arith.constant 2.500000e-01 : f32
    %66 = vector.broadcast %cst_17 : f32 to vector<4x256xf32>
    %67 = arith.mulf %66, %57 : vector<4x256xf32>
    %68 = arith.addf %65, %67 : vector<4x256xf32>
    %cst_18 = arith.constant 7.500000e-01 : f32
    %69 = vector.broadcast %cst_18 : f32 to vector<4x256xf32>
    %70 = arith.mulf %69, %29 : vector<4x256xf32>
    %cst_19 = arith.constant 2.500000e-01 : f32
    %71 = vector.broadcast %cst_19 : f32 to vector<4x256xf32>
    %72 = arith.mulf %71, %63 : vector<4x256xf32>
    %73 = arith.addf %70, %72 : vector<4x256xf32>
    %c0_20 = arith.constant 0 : index
    %c0_21 = arith.constant 0 : index
    %74 = vector.load %arg2[%c0_20, %c0_21] : memref<16x48xbf16, #tpu.memory_space<vmem>>, vector<16x48xbf16>
    %c0_22 = arith.constant 0 : index
    %c0_23 = arith.constant 0 : index
    %75 = vector.load %arg3[%c0_22, %c0_23] : memref<16x2xf32, #tpu.memory_space<vmem>>, vector<16x2xf32>
    %76 = vector.extract_strided_slice %75 {offsets = [0, 0], sizes = [16, 1], strides = [1, 1]} : vector<16x2xf32> to vector<16x1xf32>
    %c0_24 = arith.constant 0 : index
    %c0_25 = arith.constant 0 : index
    %77 = vector.load %arg3[%c0_24, %c0_25] : memref<16x2xf32, #tpu.memory_space<vmem>>, vector<16x2xf32>
    %78 = vector.extract_strided_slice %77 {offsets = [0, 1], sizes = [16, 1], strides = [1, 1]} : vector<16x2xf32> to vector<16x1xf32>
    %c17_i32 = arith.constant 17 : i32
    %79 = tpu.dynamic_rotate %73 by %c17_i32 dim 1 : vector<4x256xf32>, i32 -> vector<4x256xf32>
    %c-1_i32 = arith.constant -1 : i32
    %80 = vector.broadcast %c-1_i32 : i32 to vector<1x256xi32>
    %81 = arith.addi %5, %80 : vector<1x256xi32>
    %c0_i32_26 = arith.constant 0 : i32
    %82 = vector.broadcast %c0_i32_26 : i32 to vector<1x256xi32>
    %83 = arith.cmpi sge, %81, %82 : vector<1x256xi32>
    %c-1_i32_27 = arith.constant -1 : i32
    %84 = vector.broadcast %c-1_i32_27 : i32 to vector<1x256xi32>
    %85 = arith.addi %5, %84 : vector<1x256xi32>
    %c15_i32_28 = arith.constant 15 : i32
    %86 = vector.broadcast %c15_i32_28 : i32 to vector<1x256xi32>
    %87 = arith.cmpi sle, %85, %86 : vector<1x256xi32>
    %88 = arith.andi %83, %87 : vector<1x256xi1>
    %c-1_i32_29 = arith.constant -1 : i32
    %89 = vector.broadcast %c-1_i32_29 : i32 to vector<1x256xi32>
    %90 = arith.addi %7, %89 : vector<1x256xi32>
    %c0_i32_30 = arith.constant 0 : i32
    %91 = vector.broadcast %c0_i32_30 : i32 to vector<1x256xi32>
    %92 = arith.cmpi sge, %90, %91 : vector<1x256xi32>
    %93 = arith.andi %88, %92 : vector<1x256xi1>
    %c-1_i32_31 = arith.constant -1 : i32
    %94 = vector.broadcast %c-1_i32_31 : i32 to vector<1x256xi32>
    %95 = arith.addi %7, %94 : vector<1x256xi32>
    %c15_i32_32 = arith.constant 15 : i32
    %96 = vector.broadcast %c15_i32_32 : i32 to vector<1x256xi32>
    %97 = arith.cmpi sle, %95, %96 : vector<1x256xi32>
    %98 = arith.andi %93, %97 : vector<1x256xi1>
    %cst_33 = arith.constant 0.000000e+00 : f32
    %99 = vector.shape_cast %98 : vector<1x256xi1> to vector<1x256xi1>
    %100 = vector.broadcast %99 : vector<1x256xi1> to vector<4x256xi1>
    %101 = vector.broadcast %cst_33 : f32 to vector<4x256xf32>
    %102 = arith.select %100, %79, %101 : vector<4x256xi1>, vector<4x256xf32>
    %c0_34 = arith.constant 0 : index
    %c0_35 = arith.constant 0 : index
    %103 = vector.load %arg5[%c0_34, %c0_35] : memref<48x256xf32, #tpu.memory_space<vmem>>, vector<4x256xf32>
    tpu.vector_store %arg5[%c0_34, %c0_35], %102 {strides = array<i32>} : memref<48x256xf32, #tpu.memory_space<vmem>>, vector<4x256xf32>,
    %c16_i32_36 = arith.constant 16 : i32
    %104 = tpu.dynamic_rotate %68 by %c16_i32_36 dim 1 : vector<4x256xf32>, i32 -> vector<4x256xf32>
    %c-1_i32_37 = arith.constant -1 : i32
    %105 = vector.broadcast %c-1_i32_37 : i32 to vector<1x256xi32>
    %106 = arith.addi %5, %105 : vector<1x256xi32>
    %c0_i32_38 = arith.constant 0 : i32
    %107 = vector.broadcast %c0_i32_38 : i32 to vector<1x256xi32>
    %108 = arith.cmpi sge, %106, %107 : vector<1x256xi32>
    %c-1_i32_39 = arith.constant -1 : i32
    %109 = vector.broadcast %c-1_i32_39 : i32 to vector<1x256xi32>
    %110 = arith.addi %5, %109 : vector<1x256xi32>
    %c15_i32_40 = arith.constant 15 : i32
    %111 = vector.broadcast %c15_i32_40 : i32 to vector<1x256xi32>
    %112 = arith.cmpi sle, %110, %111 : vector<1x256xi32>
    %113 = arith.andi %108, %112 : vector<1x256xi1>
    %c0_i32_41 = arith.constant 0 : i32
    %114 = vector.broadcast %c0_i32_41 : i32 to vector<1x256xi32>
    %115 = arith.addi %7, %114 : vector<1x256xi32>
    %c0_i32_42 = arith.constant 0 : i32
    %116 = vector.broadcast %c0_i32_42 : i32 to vector<1x256xi32>
    %117 = arith.cmpi sge, %115, %116 : vector<1x256xi32>
    %118 = arith.andi %113, %117 : vector<1x256xi1>
    %c0_i32_43 = arith.constant 0 : i32
    %119 = vector.broadcast %c0_i32_43 : i32 to vector<1x256xi32>
    %120 = arith.addi %7, %119 : vector<1x256xi32>
    %c15_i32_44 = arith.constant 15 : i32
    %121 = vector.broadcast %c15_i32_44 : i32 to vector<1x256xi32>
    %122 = arith.cmpi sle, %120, %121 : vector<1x256xi32>
    %123 = arith.andi %118, %122 : vector<1x256xi1>
    %cst_45 = arith.constant 0.000000e+00 : f32
    %124 = vector.shape_cast %123 : vector<1x256xi1> to vector<1x256xi1>
    %125 = vector.broadcast %124 : vector<1x256xi1> to vector<4x256xi1>
    %126 = vector.broadcast %cst_45 : f32 to vector<4x256xf32>
    %127 = arith.select %125, %104, %126 : vector<4x256xi1>, vector<4x256xf32>
    %c4 = arith.constant 4 : index
    %c0_46 = arith.constant 0 : index
    %128 = vector.load %arg5[%c4, %c0_46] : memref<48x256xf32, #tpu.memory_space<vmem>>, vector<4x256xf32>
    tpu.vector_store %arg5[%c4, %c0_46], %127 {strides = array<i32>} : memref<48x256xf32, #tpu.memory_space<vmem>>, vector<4x256xf32>,
    %c16_i32_47 = arith.constant 16 : i32
    %129 = tpu.dynamic_rotate %73 by %c16_i32_47 dim 1 : vector<4x256xf32>, i32 -> vector<4x256xf32>
    %c-1_i32_48 = arith.constant -1 : i32
    %130 = vector.broadcast %c-1_i32_48 : i32 to vector<1x256xi32>
    %131 = arith.addi %5, %130 : vector<1x256xi32>
    %c0_i32_49 = arith.constant 0 : i32
    %132 = vector.broadcast %c0_i32_49 : i32 to vector<1x256xi32>
    %133 = arith.cmpi sge, %131, %132 : vector<1x256xi32>
    %c-1_i32_50 = arith.constant -1 : i32
    %134 = vector.broadcast %c-1_i32_50 : i32 to vector<1x256xi32>
    %135 = arith.addi %5, %134 : vector<1x256xi32>
    %c15_i32_51 = arith.constant 15 : i32
    %136 = vector.broadcast %c15_i32_51 : i32 to vector<1x256xi32>
    %137 = arith.cmpi sle, %135, %136 : vector<1x256xi32>
    %138 = arith.andi %133, %137 : vector<1x256xi1>
    %c0_i32_52 = arith.constant 0 : i32
    %139 = vector.broadcast %c0_i32_52 : i32 to vector<1x256xi32>
    %140 = arith.addi %7, %139 : vector<1x256xi32>
    %c0_i32_53 = arith.constant 0 : i32
    %141 = vector.broadcast %c0_i32_53 : i32 to vector<1x256xi32>
    %142 = arith.cmpi sge, %140, %141 : vector<1x256xi32>
    %143 = arith.andi %138, %142 : vector<1x256xi1>
    %c0_i32_54 = arith.constant 0 : i32
    %144 = vector.broadcast %c0_i32_54 : i32 to vector<1x256xi32>
    %145 = arith.addi %7, %144 : vector<1x256xi32>
    %c15_i32_55 = arith.constant 15 : i32
    %146 = vector.broadcast %c15_i32_55 : i32 to vector<1x256xi32>
    %147 = arith.cmpi sle, %145, %146 : vector<1x256xi32>
    %148 = arith.andi %143, %147 : vector<1x256xi1>
    %cst_56 = arith.constant 0.000000e+00 : f32
    %149 = vector.shape_cast %148 : vector<1x256xi1> to vector<1x256xi1>
    %150 = vector.broadcast %149 : vector<1x256xi1> to vector<4x256xi1>
    %151 = vector.broadcast %cst_56 : f32 to vector<4x256xf32>
    %152 = arith.select %150, %129, %151 : vector<4x256xi1>, vector<4x256xf32>
    %c8 = arith.constant 8 : index
    %c0_57 = arith.constant 0 : index
    %153 = vector.load %arg5[%c8, %c0_57] : memref<48x256xf32, #tpu.memory_space<vmem>>, vector<4x256xf32>
    tpu.vector_store %arg5[%c8, %c0_57], %152 {strides = array<i32>} : memref<48x256xf32, #tpu.memory_space<vmem>>, vector<4x256xf32>,
    %c15_i32_58 = arith.constant 15 : i32
    %154 = tpu.dynamic_rotate %68 by %c15_i32_58 dim 1 : vector<4x256xf32>, i32 -> vector<4x256xf32>
    %c-1_i32_59 = arith.constant -1 : i32
    %155 = vector.broadcast %c-1_i32_59 : i32 to vector<1x256xi32>
    %156 = arith.addi %5, %155 : vector<1x256xi32>
    %c0_i32_60 = arith.constant 0 : i32
    %157 = vector.broadcast %c0_i32_60 : i32 to vector<1x256xi32>
    %158 = arith.cmpi sge, %156, %157 : vector<1x256xi32>
    %c-1_i32_61 = arith.constant -1 : i32
    %159 = vector.broadcast %c-1_i32_61 : i32 to vector<1x256xi32>
    %160 = arith.addi %5, %159 : vector<1x256xi32>
    %c15_i32_62 = arith.constant 15 : i32
    %161 = vector.broadcast %c15_i32_62 : i32 to vector<1x256xi32>
    %162 = arith.cmpi sle, %160, %161 : vector<1x256xi32>
    %163 = arith.andi %158, %162 : vector<1x256xi1>
    %c1_i32_63 = arith.constant 1 : i32
    %164 = vector.broadcast %c1_i32_63 : i32 to vector<1x256xi32>
    %165 = arith.addi %7, %164 : vector<1x256xi32>
    %c0_i32_64 = arith.constant 0 : i32
    %166 = vector.broadcast %c0_i32_64 : i32 to vector<1x256xi32>
    %167 = arith.cmpi sge, %165, %166 : vector<1x256xi32>
    %168 = arith.andi %163, %167 : vector<1x256xi1>
    %c1_i32_65 = arith.constant 1 : i32
    %169 = vector.broadcast %c1_i32_65 : i32 to vector<1x256xi32>
    %170 = arith.addi %7, %169 : vector<1x256xi32>
    %c15_i32_66 = arith.constant 15 : i32
    %171 = vector.broadcast %c15_i32_66 : i32 to vector<1x256xi32>
    %172 = arith.cmpi sle, %170, %171 : vector<1x256xi32>
    %173 = arith.andi %168, %172 : vector<1x256xi1>
    %cst_67 = arith.constant 0.000000e+00 : f32
    %174 = vector.shape_cast %173 : vector<1x256xi1> to vector<1x256xi1>
    %175 = vector.broadcast %174 : vector<1x256xi1> to vector<4x256xi1>
    %176 = vector.broadcast %cst_67 : f32 to vector<4x256xf32>
    %177 = arith.select %175, %154, %176 : vector<4x256xi1>, vector<4x256xf32>
    %c12 = arith.constant 12 : index
    %c0_68 = arith.constant 0 : index
    %178 = vector.load %arg5[%c12, %c0_68] : memref<48x256xf32, #tpu.memory_space<vmem>>, vector<4x256xf32>
    tpu.vector_store %arg5[%c12, %c0_68], %177 {strides = array<i32>} : memref<48x256xf32, #tpu.memory_space<vmem>>, vector<4x256xf32>,
    %c1_i32_69 = arith.constant 1 : i32
    %179 = tpu.dynamic_rotate %51 by %c1_i32_69 dim 1 : vector<4x256xf32>, i32 -> vector<4x256xf32>
    %c0_i32_70 = arith.constant 0 : i32
    %180 = vector.broadcast %c0_i32_70 : i32 to vector<1x256xi32>
    %181 = arith.addi %5, %180 : vector<1x256xi32>
    %c0_i32_71 = arith.constant 0 : i32
    %182 = vector.broadcast %c0_i32_71 : i32 to vector<1x256xi32>
    %183 = arith.cmpi sge, %181, %182 : vector<1x256xi32>
    %c0_i32_72 = arith.constant 0 : i32
    %184 = vector.broadcast %c0_i32_72 : i32 to vector<1x256xi32>
    %185 = arith.addi %5, %184 : vector<1x256xi32>
    %c15_i32_73 = arith.constant 15 : i32
    %186 = vector.broadcast %c15_i32_73 : i32 to vector<1x256xi32>
    %187 = arith.cmpi sle, %185, %186 : vector<1x256xi32>
    %188 = arith.andi %183, %187 : vector<1x256xi1>
    %c-1_i32_74 = arith.constant -1 : i32
    %189 = vector.broadcast %c-1_i32_74 : i32 to vector<1x256xi32>
    %190 = arith.addi %7, %189 : vector<1x256xi32>
    %c0_i32_75 = arith.constant 0 : i32
    %191 = vector.broadcast %c0_i32_75 : i32 to vector<1x256xi32>
    %192 = arith.cmpi sge, %190, %191 : vector<1x256xi32>
    %193 = arith.andi %188, %192 : vector<1x256xi1>
    %c-1_i32_76 = arith.constant -1 : i32
    %194 = vector.broadcast %c-1_i32_76 : i32 to vector<1x256xi32>
    %195 = arith.addi %7, %194 : vector<1x256xi32>
    %c15_i32_77 = arith.constant 15 : i32
    %196 = vector.broadcast %c15_i32_77 : i32 to vector<1x256xi32>
    %197 = arith.cmpi sle, %195, %196 : vector<1x256xi32>
    %198 = arith.andi %193, %197 : vector<1x256xi1>
    %cst_78 = arith.constant 0.000000e+00 : f32
    %199 = vector.shape_cast %198 : vector<1x256xi1> to vector<1x256xi1>
    %200 = vector.broadcast %199 : vector<1x256xi1> to vector<4x256xi1>
    %201 = vector.broadcast %cst_78 : f32 to vector<4x256xf32>
    %202 = arith.select %200, %179, %201 : vector<4x256xi1>, vector<4x256xf32>
    %c16 = arith.constant 16 : index
    %c0_79 = arith.constant 0 : index
    %203 = vector.load %arg5[%c16, %c0_79] : memref<48x256xf32, #tpu.memory_space<vmem>>, vector<4x256xf32>
    tpu.vector_store %arg5[%c16, %c0_79], %202 {strides = array<i32>} : memref<48x256xf32, #tpu.memory_space<vmem>>, vector<4x256xf32>,
    %c20 = arith.constant 20 : index
    %c0_80 = arith.constant 0 : index
    %204 = vector.load %arg5[%c20, %c0_80] : memref<48x256xf32, #tpu.memory_space<vmem>>, vector<4x256xf32>
    tpu.vector_store %arg5[%c20, %c0_80], %46 {strides = array<i32>} : memref<48x256xf32, #tpu.memory_space<vmem>>, vector<4x256xf32>,
    %c24 = arith.constant 24 : index
    %c0_81 = arith.constant 0 : index
    %205 = vector.load %arg5[%c24, %c0_81] : memref<48x256xf32, #tpu.memory_space<vmem>>, vector<4x256xf32>
    tpu.vector_store %arg5[%c24, %c0_81], %51 {strides = array<i32>} : memref<48x256xf32, #tpu.memory_space<vmem>>, vector<4x256xf32>,
    %c255_i32_82 = arith.constant 255 : i32
    %206 = tpu.dynamic_rotate %46 by %c255_i32_82 dim 1 : vector<4x256xf32>, i32 -> vector<4x256xf32>
    %c0_i32_83 = arith.constant 0 : i32
    %207 = vector.broadcast %c0_i32_83 : i32 to vector<1x256xi32>
    %208 = arith.addi %5, %207 : vector<1x256xi32>
    %c0_i32_84 = arith.constant 0 : i32
    %209 = vector.broadcast %c0_i32_84 : i32 to vector<1x256xi32>
    %210 = arith.cmpi sge, %208, %209 : vector<1x256xi32>
    %c0_i32_85 = arith.constant 0 : i32
    %211 = vector.broadcast %c0_i32_85 : i32 to vector<1x256xi32>
    %212 = arith.addi %5, %211 : vector<1x256xi32>
    %c15_i32_86 = arith.constant 15 : i32
    %213 = vector.broadcast %c15_i32_86 : i32 to vector<1x256xi32>
    %214 = arith.cmpi sle, %212, %213 : vector<1x256xi32>
    %215 = arith.andi %210, %214 : vector<1x256xi1>
    %c1_i32_87 = arith.constant 1 : i32
    %216 = vector.broadcast %c1_i32_87 : i32 to vector<1x256xi32>
    %217 = arith.addi %7, %216 : vector<1x256xi32>
    %c0_i32_88 = arith.constant 0 : i32
    %218 = vector.broadcast %c0_i32_88 : i32 to vector<1x256xi32>
    %219 = arith.cmpi sge, %217, %218 : vector<1x256xi32>
    %220 = arith.andi %215, %219 : vector<1x256xi1>
    %c1_i32_89 = arith.constant 1 : i32
    %221 = vector.broadcast %c1_i32_89 : i32 to vector<1x256xi32>
    %222 = arith.addi %7, %221 : vector<1x256xi32>
    %c15_i32_90 = arith.constant 15 : i32
    %223 = vector.broadcast %c15_i32_90 : i32 to vector<1x256xi32>
    %224 = arith.cmpi sle, %222, %223 : vector<1x256xi32>
    %225 = arith.andi %220, %224 : vector<1x256xi1>
    %cst_91 = arith.constant 0.000000e+00 : f32
    %226 = vector.shape_cast %225 : vector<1x256xi1> to vector<1x256xi1>
    %227 = vector.broadcast %226 : vector<1x256xi1> to vector<4x256xi1>
    %228 = vector.broadcast %cst_91 : f32 to vector<4x256xf32>
    %229 = arith.select %227, %206, %228 : vector<4x256xi1>, vector<4x256xf32>
    %c28 = arith.constant 28 : index
    %c0_92 = arith.constant 0 : index
    %230 = vector.load %arg5[%c28, %c0_92] : memref<48x256xf32, #tpu.memory_space<vmem>>, vector<4x256xf32>
    tpu.vector_store %arg5[%c28, %c0_92], %229 {strides = array<i32>} : memref<48x256xf32, #tpu.memory_space<vmem>>, vector<4x256xf32>,
    %c1_i32_93 = arith.constant 1 : i32
    %231 = tpu.dynamic_rotate %73 by %c1_i32_93 dim 1 : vector<4x256xf32>, i32 -> vector<4x256xf32>
    %c0_i32_94 = arith.constant 0 : i32
    %232 = vector.broadcast %c0_i32_94 : i32 to vector<1x256xi32>
    %233 = arith.addi %5, %232 : vector<1x256xi32>
    %c0_i32_95 = arith.constant 0 : i32
    %234 = vector.broadcast %c0_i32_95 : i32 to vector<1x256xi32>
    %235 = arith.cmpi sge, %233, %234 : vector<1x256xi32>
    %c0_i32_96 = arith.constant 0 : i32
    %236 = vector.broadcast %c0_i32_96 : i32 to vector<1x256xi32>
    %237 = arith.addi %5, %236 : vector<1x256xi32>
    %c15_i32_97 = arith.constant 15 : i32
    %238 = vector.broadcast %c15_i32_97 : i32 to vector<1x256xi32>
    %239 = arith.cmpi sle, %237, %238 : vector<1x256xi32>
    %240 = arith.andi %235, %239 : vector<1x256xi1>
    %c-1_i32_98 = arith.constant -1 : i32
    %241 = vector.broadcast %c-1_i32_98 : i32 to vector<1x256xi32>
    %242 = arith.addi %7, %241 : vector<1x256xi32>
    %c0_i32_99 = arith.constant 0 : i32
    %243 = vector.broadcast %c0_i32_99 : i32 to vector<1x256xi32>
    %244 = arith.cmpi sge, %242, %243 : vector<1x256xi32>
    %245 = arith.andi %240, %244 : vector<1x256xi1>
    %c-1_i32_100 = arith.constant -1 : i32
    %246 = vector.broadcast %c-1_i32_100 : i32 to vector<1x256xi32>
    %247 = arith.addi %7, %246 : vector<1x256xi32>
    %c15_i32_101 = arith.constant 15 : i32
    %248 = vector.broadcast %c15_i32_101 : i32 to vector<1x256xi32>
    %249 = arith.cmpi sle, %247, %248 : vector<1x256xi32>
    %250 = arith.andi %245, %249 : vector<1x256xi1>
    %cst_102 = arith.constant 0.000000e+00 : f32
    %251 = vector.shape_cast %250 : vector<1x256xi1> to vector<1x256xi1>
    %252 = vector.broadcast %251 : vector<1x256xi1> to vector<4x256xi1>
    %253 = vector.broadcast %cst_102 : f32 to vector<4x256xf32>
    %254 = arith.select %252, %231, %253 : vector<4x256xi1>, vector<4x256xf32>
    %c32 = arith.constant 32 : index
    %c0_103 = arith.constant 0 : index
    %255 = vector.load %arg5[%c32, %c0_103] : memref<48x256xf32, #tpu.memory_space<vmem>>, vector<4x256xf32>
    tpu.vector_store %arg5[%c32, %c0_103], %254 {strides = array<i32>} : memref<48x256xf32, #tpu.memory_space<vmem>>, vector<4x256xf32>,
    %c36 = arith.constant 36 : index
    %c0_104 = arith.constant 0 : index
    %256 = vector.load %arg5[%c36, %c0_104] : memref<48x256xf32, #tpu.memory_space<vmem>>, vector<4x256xf32>
    tpu.vector_store %arg5[%c36, %c0_104], %68 {strides = array<i32>} : memref<48x256xf32, #tpu.memory_space<vmem>>, vector<4x256xf32>,
    %c40 = arith.constant 40 : index
    %c0_105 = arith.constant 0 : index
    %257 = vector.load %arg5[%c40, %c0_105] : memref<48x256xf32, #tpu.memory_space<vmem>>, vector<4x256xf32>
    tpu.vector_store %arg5[%c40, %c0_105], %73 {strides = array<i32>} : memref<48x256xf32, #tpu.memory_space<vmem>>, vector<4x256xf32>,
    %c255_i32_106 = arith.constant 255 : i32
    %258 = tpu.dynamic_rotate %68 by %c255_i32_106 dim 1 : vector<4x256xf32>, i32 -> vector<4x256xf32>
    %c0_i32_107 = arith.constant 0 : i32
    %259 = vector.broadcast %c0_i32_107 : i32 to vector<1x256xi32>
    %260 = arith.addi %5, %259 : vector<1x256xi32>
    %c0_i32_108 = arith.constant 0 : i32
    %261 = vector.broadcast %c0_i32_108 : i32 to vector<1x256xi32>
    %262 = arith.cmpi sge, %260, %261 : vector<1x256xi32>
    %c0_i32_109 = arith.constant 0 : i32
    %263 = vector.broadcast %c0_i32_109 : i32 to vector<1x256xi32>
    %264 = arith.addi %5, %263 : vector<1x256xi32>
    %c15_i32_110 = arith.constant 15 : i32
    %265 = vector.broadcast %c15_i32_110 : i32 to vector<1x256xi32>
    %266 = arith.cmpi sle, %264, %265 : vector<1x256xi32>
    %267 = arith.andi %262, %266 : vector<1x256xi1>
    %c1_i32_111 = arith.constant 1 : i32
    %268 = vector.broadcast %c1_i32_111 : i32 to vector<1x256xi32>
    %269 = arith.addi %7, %268 : vector<1x256xi32>
    %c0_i32_112 = arith.constant 0 : i32
    %270 = vector.broadcast %c0_i32_112 : i32 to vector<1x256xi32>
    %271 = arith.cmpi sge, %269, %270 : vector<1x256xi32>
    %272 = arith.andi %267, %271 : vector<1x256xi1>
    %c1_i32_113 = arith.constant 1 : i32
    %273 = vector.broadcast %c1_i32_113 : i32 to vector<1x256xi32>
    %274 = arith.addi %7, %273 : vector<1x256xi32>
    %c15_i32_114 = arith.constant 15 : i32
    %275 = vector.broadcast %c15_i32_114 : i32 to vector<1x256xi32>
    %276 = arith.cmpi sle, %274, %275 : vector<1x256xi32>
    %277 = arith.andi %272, %276 : vector<1x256xi1>
    %cst_115 = arith.constant 0.000000e+00 : f32
    %278 = vector.shape_cast %277 : vector<1x256xi1> to vector<1x256xi1>
    %279 = vector.broadcast %278 : vector<1x256xi1> to vector<4x256xi1>
    %280 = vector.broadcast %cst_115 : f32 to vector<4x256xf32>
    %281 = arith.select %279, %258, %280 : vector<4x256xi1>, vector<4x256xf32>
    %c44 = arith.constant 44 : index
    %c0_116 = arith.constant 0 : index
    %282 = vector.load %arg5[%c44, %c0_116] : memref<48x256xf32, #tpu.memory_space<vmem>>, vector<4x256xf32>
    tpu.vector_store %arg5[%c44, %c0_116], %281 {strides = array<i32>} : memref<48x256xf32, #tpu.memory_space<vmem>>, vector<4x256xf32>,
    %c0_117 = arith.constant 0 : index
    %c0_118 = arith.constant 0 : index
    %283 = vector.load %arg5[%c0_117, %c0_118] : memref<48x256xf32, #tpu.memory_space<vmem>>, vector<48x256xf32>
    %284 = arith.truncf %283 : vector<48x256xf32> to vector<48x256xbf16>
    %cst_119 = arith.constant dense<0.000000e+00> : vector<16x256xf32>
    %285 = tpu.matmul %74, %284, %cst_119 {dimension_numbers = #tpu.dot_dimension_numbers<[1], [0], [0], [1], [0, 0, 1, 1], [], []>} : vector<16x48xbf16>, vector<48x256xbf16>, vector<16x256xf32> -> vector<16x256xf32>
    %286 = vector.broadcast %76 : vector<16x1xf32> to vector<16x256xf32>
    %287 = arith.addf %285, %286 : vector<16x256xf32>
    %cst_120 = arith.constant 0.000000e+00 : f32
    %288 = vector.broadcast %cst_120 : f32 to vector<16x256xf32>
    %289 = arith.cmpf ogt, %287, %288 : vector<16x256xf32>
    %290 = vector.broadcast %78 : vector<16x1xf32> to vector<16x256xf32>
    %291 = arith.mulf %290, %287 : vector<16x256xf32>
    %292 = arith.select %289, %287, %291 : vector<16x256xi1>, vector<16x256xf32>
    %c0_121 = arith.constant 0 : index
    %c0_122 = arith.constant 0 : index
    %c0_123 = arith.constant 0 : index
    %c0_124 = arith.constant 0 : index
    %293 = vector.load %arg4[%c0_121, %c0_122, %c0_123, %c0_124] : memref<1x2x16x256xf32, #tpu.memory_space<vmem>>, vector<1x1x16x256xf32>
    %294 = vector.shape_cast %293 : vector<1x1x16x256xf32> to vector<16x256xf32>
    %295 = vector.shape_cast %292 : vector<16x256xf32> to vector<1x1x16x256xf32>
    tpu.vector_store %arg4[%c0_121, %c0_122, %c0_123, %c0_124], %295 {strides = array<i32>} : memref<1x2x16x256xf32, #tpu.memory_space<vmem>>, vector<1x1x16x256xf32>,
    %c1_i32_125 = arith.constant 1 : i32
    %296 = tpu.dynamic_rotate %51 by %c1_i32_125 dim 1 : vector<4x256xf32>, i32 -> vector<4x256xf32>
    %c0_i32_126 = arith.constant 0 : i32
    %297 = vector.broadcast %c0_i32_126 : i32 to vector<1x256xi32>
    %298 = arith.addi %5, %297 : vector<1x256xi32>
    %c0_i32_127 = arith.constant 0 : i32
    %299 = vector.broadcast %c0_i32_127 : i32 to vector<1x256xi32>
    %300 = arith.cmpi sge, %298, %299 : vector<1x256xi32>
    %c0_i32_128 = arith.constant 0 : i32
    %301 = vector.broadcast %c0_i32_128 : i32 to vector<1x256xi32>
    %302 = arith.addi %5, %301 : vector<1x256xi32>
    %c15_i32_129 = arith.constant 15 : i32
    %303 = vector.broadcast %c15_i32_129 : i32 to vector<1x256xi32>
    %304 = arith.cmpi sle, %302, %303 : vector<1x256xi32>
    %305 = arith.andi %300, %304 : vector<1x256xi1>
    %c-1_i32_130 = arith.constant -1 : i32
    %306 = vector.broadcast %c-1_i32_130 : i32 to vector<1x256xi32>
    %307 = arith.addi %7, %306 : vector<1x256xi32>
    %c0_i32_131 = arith.constant 0 : i32
    %308 = vector.broadcast %c0_i32_131 : i32 to vector<1x256xi32>
    %309 = arith.cmpi sge, %307, %308 : vector<1x256xi32>
    %310 = arith.andi %305, %309 : vector<1x256xi1>
    %c-1_i32_132 = arith.constant -1 : i32
    %311 = vector.broadcast %c-1_i32_132 : i32 to vector<1x256xi32>
    %312 = arith.addi %7, %311 : vector<1x256xi32>
    %c15_i32_133 = arith.constant 15 : i32
    %313 = vector.broadcast %c15_i32_133 : i32 to vector<1x256xi32>
    %314 = arith.cmpi sle, %312, %313 : vector<1x256xi32>
    %315 = arith.andi %310, %314 : vector<1x256xi1>
    %cst_134 = arith.constant 0.000000e+00 : f32
    %316 = vector.shape_cast %315 : vector<1x256xi1> to vector<1x256xi1>
    %317 = vector.broadcast %316 : vector<1x256xi1> to vector<4x256xi1>
    %318 = vector.broadcast %cst_134 : f32 to vector<4x256xf32>
    %319 = arith.select %317, %296, %318 : vector<4x256xi1>, vector<4x256xf32>
    %c0_135 = arith.constant 0 : index
    %c0_136 = arith.constant 0 : index
    %320 = vector.load %arg5[%c0_135, %c0_136] : memref<48x256xf32, #tpu.memory_space<vmem>>, vector<4x256xf32>
    tpu.vector_store %arg5[%c0_135, %c0_136], %319 {strides = array<i32>} : memref<48x256xf32, #tpu.memory_space<vmem>>, vector<4x256xf32>,
    %c4_137 = arith.constant 4 : index
    %c0_138 = arith.constant 0 : index
    %321 = vector.load %arg5[%c4_137, %c0_138] : memref<48x256xf32, #tpu.memory_space<vmem>>, vector<4x256xf32>
    tpu.vector_store %arg5[%c4_137, %c0_138], %46 {strides = array<i32>} : memref<48x256xf32, #tpu.memory_space<vmem>>, vector<4x256xf32>,
    %c8_139 = arith.constant 8 : index
    %c0_140 = arith.constant 0 : index
    %322 = vector.load %arg5[%c8_139, %c0_140] : memref<48x256xf32, #tpu.memory_space<vmem>>, vector<4x256xf32>
    tpu.vector_store %arg5[%c8_139, %c0_140], %51 {strides = array<i32>} : memref<48x256xf32, #tpu.memory_space<vmem>>, vector<4x256xf32>,
    %c255_i32_141 = arith.constant 255 : i32
    %323 = tpu.dynamic_rotate %46 by %c255_i32_141 dim 1 : vector<4x256xf32>, i32 -> vector<4x256xf32>
    %c0_i32_142 = arith.constant 0 : i32
    %324 = vector.broadcast %c0_i32_142 : i32 to vector<1x256xi32>
    %325 = arith.addi %5, %324 : vector<1x256xi32>
    %c0_i32_143 = arith.constant 0 : i32
    %326 = vector.broadcast %c0_i32_143 : i32 to vector<1x256xi32>
    %327 = arith.cmpi sge, %325, %326 : vector<1x256xi32>
    %c0_i32_144 = arith.constant 0 : i32
    %328 = vector.broadcast %c0_i32_144 : i32 to vector<1x256xi32>
    %329 = arith.addi %5, %328 : vector<1x256xi32>
    %c15_i32_145 = arith.constant 15 : i32
    %330 = vector.broadcast %c15_i32_145 : i32 to vector<1x256xi32>
    %331 = arith.cmpi sle, %329, %330 : vector<1x256xi32>
    %332 = arith.andi %327, %331 : vector<1x256xi1>
    %c1_i32_146 = arith.constant 1 : i32
    %333 = vector.broadcast %c1_i32_146 : i32 to vector<1x256xi32>
    %334 = arith.addi %7, %333 : vector<1x256xi32>
    %c0_i32_147 = arith.constant 0 : i32
    %335 = vector.broadcast %c0_i32_147 : i32 to vector<1x256xi32>
    %336 = arith.cmpi sge, %334, %335 : vector<1x256xi32>
    %337 = arith.andi %332, %336 : vector<1x256xi1>
    %c1_i32_148 = arith.constant 1 : i32
    %338 = vector.broadcast %c1_i32_148 : i32 to vector<1x256xi32>
    %339 = arith.addi %7, %338 : vector<1x256xi32>
    %c15_i32_149 = arith.constant 15 : i32
    %340 = vector.broadcast %c15_i32_149 : i32 to vector<1x256xi32>
    %341 = arith.cmpi sle, %339, %340 : vector<1x256xi32>
    %342 = arith.andi %337, %341 : vector<1x256xi1>
    %cst_150 = arith.constant 0.000000e+00 : f32
    %343 = vector.shape_cast %342 : vector<1x256xi1> to vector<1x256xi1>
    %344 = vector.broadcast %343 : vector<1x256xi1> to vector<4x256xi1>
    %345 = vector.broadcast %cst_150 : f32 to vector<4x256xf32>
    %346 = arith.select %344, %323, %345 : vector<4x256xi1>, vector<4x256xf32>
    %c12_151 = arith.constant 12 : index
    %c0_152 = arith.constant 0 : index
    %347 = vector.load %arg5[%c12_151, %c0_152] : memref<48x256xf32, #tpu.memory_space<vmem>>, vector<4x256xf32>
    tpu.vector_store %arg5[%c12_151, %c0_152], %346 {strides = array<i32>} : memref<48x256xf32, #tpu.memory_space<vmem>>, vector<4x256xf32>,
    %c1_i32_153 = arith.constant 1 : i32
    %348 = tpu.dynamic_rotate %73 by %c1_i32_153 dim 1 : vector<4x256xf32>, i32 -> vector<4x256xf32>
    %c0_i32_154 = arith.constant 0 : i32
    %349 = vector.broadcast %c0_i32_154 : i32 to vector<1x256xi32>
    %350 = arith.addi %5, %349 : vector<1x256xi32>
    %c0_i32_155 = arith.constant 0 : i32
    %351 = vector.broadcast %c0_i32_155 : i32 to vector<1x256xi32>
    %352 = arith.cmpi sge, %350, %351 : vector<1x256xi32>
    %c0_i32_156 = arith.constant 0 : i32
    %353 = vector.broadcast %c0_i32_156 : i32 to vector<1x256xi32>
    %354 = arith.addi %5, %353 : vector<1x256xi32>
    %c15_i32_157 = arith.constant 15 : i32
    %355 = vector.broadcast %c15_i32_157 : i32 to vector<1x256xi32>
    %356 = arith.cmpi sle, %354, %355 : vector<1x256xi32>
    %357 = arith.andi %352, %356 : vector<1x256xi1>
    %c-1_i32_158 = arith.constant -1 : i32
    %358 = vector.broadcast %c-1_i32_158 : i32 to vector<1x256xi32>
    %359 = arith.addi %7, %358 : vector<1x256xi32>
    %c0_i32_159 = arith.constant 0 : i32
    %360 = vector.broadcast %c0_i32_159 : i32 to vector<1x256xi32>
    %361 = arith.cmpi sge, %359, %360 : vector<1x256xi32>
    %362 = arith.andi %357, %361 : vector<1x256xi1>
    %c-1_i32_160 = arith.constant -1 : i32
    %363 = vector.broadcast %c-1_i32_160 : i32 to vector<1x256xi32>
    %364 = arith.addi %7, %363 : vector<1x256xi32>
    %c15_i32_161 = arith.constant 15 : i32
    %365 = vector.broadcast %c15_i32_161 : i32 to vector<1x256xi32>
    %366 = arith.cmpi sle, %364, %365 : vector<1x256xi32>
    %367 = arith.andi %362, %366 : vector<1x256xi1>
    %cst_162 = arith.constant 0.000000e+00 : f32
    %368 = vector.shape_cast %367 : vector<1x256xi1> to vector<1x256xi1>
    %369 = vector.broadcast %368 : vector<1x256xi1> to vector<4x256xi1>
    %370 = vector.broadcast %cst_162 : f32 to vector<4x256xf32>
    %371 = arith.select %369, %348, %370 : vector<4x256xi1>, vector<4x256xf32>
    %c16_163 = arith.constant 16 : index
    %c0_164 = arith.constant 0 : index
    %372 = vector.load %arg5[%c16_163, %c0_164] : memref<48x256xf32, #tpu.memory_space<vmem>>, vector<4x256xf32>
    tpu.vector_store %arg5[%c16_163, %c0_164], %371 {strides = array<i32>} : memref<48x256xf32, #tpu.memory_space<vmem>>, vector<4x256xf32>,
    %c20_165 = arith.constant 20 : index
    %c0_166 = arith.constant 0 : index
    %373 = vector.load %arg5[%c20_165, %c0_166] : memref<48x256xf32, #tpu.memory_space<vmem>>, vector<4x256xf32>
    tpu.vector_store %arg5[%c20_165, %c0_166], %68 {strides = array<i32>} : memref<48x256xf32, #tpu.memory_space<vmem>>, vector<4x256xf32>,
    %c24_167 = arith.constant 24 : index
    %c0_168 = arith.constant 0 : index
    %374 = vector.load %arg5[%c24_167, %c0_168] : memref<48x256xf32, #tpu.memory_space<vmem>>, vector<4x256xf32>
    tpu.vector_store %arg5[%c24_167, %c0_168], %73 {strides = array<i32>} : memref<48x256xf32, #tpu.memory_space<vmem>>, vector<4x256xf32>,
    %c255_i32_169 = arith.constant 255 : i32
    %375 = tpu.dynamic_rotate %68 by %c255_i32_169 dim 1 : vector<4x256xf32>, i32 -> vector<4x256xf32>
    %c0_i32_170 = arith.constant 0 : i32
    %376 = vector.broadcast %c0_i32_170 : i32 to vector<1x256xi32>
    %377 = arith.addi %5, %376 : vector<1x256xi32>
    %c0_i32_171 = arith.constant 0 : i32
    %378 = vector.broadcast %c0_i32_171 : i32 to vector<1x256xi32>
    %379 = arith.cmpi sge, %377, %378 : vector<1x256xi32>
    %c0_i32_172 = arith.constant 0 : i32
    %380 = vector.broadcast %c0_i32_172 : i32 to vector<1x256xi32>
    %381 = arith.addi %5, %380 : vector<1x256xi32>
    %c15_i32_173 = arith.constant 15 : i32
    %382 = vector.broadcast %c15_i32_173 : i32 to vector<1x256xi32>
    %383 = arith.cmpi sle, %381, %382 : vector<1x256xi32>
    %384 = arith.andi %379, %383 : vector<1x256xi1>
    %c1_i32_174 = arith.constant 1 : i32
    %385 = vector.broadcast %c1_i32_174 : i32 to vector<1x256xi32>
    %386 = arith.addi %7, %385 : vector<1x256xi32>
    %c0_i32_175 = arith.constant 0 : i32
    %387 = vector.broadcast %c0_i32_175 : i32 to vector<1x256xi32>
    %388 = arith.cmpi sge, %386, %387 : vector<1x256xi32>
    %389 = arith.andi %384, %388 : vector<1x256xi1>
    %c1_i32_176 = arith.constant 1 : i32
    %390 = vector.broadcast %c1_i32_176 : i32 to vector<1x256xi32>
    %391 = arith.addi %7, %390 : vector<1x256xi32>
    %c15_i32_177 = arith.constant 15 : i32
    %392 = vector.broadcast %c15_i32_177 : i32 to vector<1x256xi32>
    %393 = arith.cmpi sle, %391, %392 : vector<1x256xi32>
    %394 = arith.andi %389, %393 : vector<1x256xi1>
    %cst_178 = arith.constant 0.000000e+00 : f32
    %395 = vector.shape_cast %394 : vector<1x256xi1> to vector<1x256xi1>
    %396 = vector.broadcast %395 : vector<1x256xi1> to vector<4x256xi1>
    %397 = vector.broadcast %cst_178 : f32 to vector<4x256xf32>
    %398 = arith.select %396, %375, %397 : vector<4x256xi1>, vector<4x256xf32>
    %c28_179 = arith.constant 28 : index
    %c0_180 = arith.constant 0 : index
    %399 = vector.load %arg5[%c28_179, %c0_180] : memref<48x256xf32, #tpu.memory_space<vmem>>, vector<4x256xf32>
    tpu.vector_store %arg5[%c28_179, %c0_180], %398 {strides = array<i32>} : memref<48x256xf32, #tpu.memory_space<vmem>>, vector<4x256xf32>,
    %c241_i32 = arith.constant 241 : i32
    %400 = tpu.dynamic_rotate %51 by %c241_i32 dim 1 : vector<4x256xf32>, i32 -> vector<4x256xf32>
    %c1_i32_181 = arith.constant 1 : i32
    %401 = vector.broadcast %c1_i32_181 : i32 to vector<1x256xi32>
    %402 = arith.addi %5, %401 : vector<1x256xi32>
    %c0_i32_182 = arith.constant 0 : i32
    %403 = vector.broadcast %c0_i32_182 : i32 to vector<1x256xi32>
    %404 = arith.cmpi sge, %402, %403 : vector<1x256xi32>
    %c1_i32_183 = arith.constant 1 : i32
    %405 = vector.broadcast %c1_i32_183 : i32 to vector<1x256xi32>
    %406 = arith.addi %5, %405 : vector<1x256xi32>
    %c15_i32_184 = arith.constant 15 : i32
    %407 = vector.broadcast %c15_i32_184 : i32 to vector<1x256xi32>
    %408 = arith.cmpi sle, %406, %407 : vector<1x256xi32>
    %409 = arith.andi %404, %408 : vector<1x256xi1>
    %c-1_i32_185 = arith.constant -1 : i32
    %410 = vector.broadcast %c-1_i32_185 : i32 to vector<1x256xi32>
    %411 = arith.addi %7, %410 : vector<1x256xi32>
    %c0_i32_186 = arith.constant 0 : i32
    %412 = vector.broadcast %c0_i32_186 : i32 to vector<1x256xi32>
    %413 = arith.cmpi sge, %411, %412 : vector<1x256xi32>
    %414 = arith.andi %409, %413 : vector<1x256xi1>
    %c-1_i32_187 = arith.constant -1 : i32
    %415 = vector.broadcast %c-1_i32_187 : i32 to vector<1x256xi32>
    %416 = arith.addi %7, %415 : vector<1x256xi32>
    %c15_i32_188 = arith.constant 15 : i32
    %417 = vector.broadcast %c15_i32_188 : i32 to vector<1x256xi32>
    %418 = arith.cmpi sle, %416, %417 : vector<1x256xi32>
    %419 = arith.andi %414, %418 : vector<1x256xi1>
    %cst_189 = arith.constant 0.000000e+00 : f32
    %420 = vector.shape_cast %419 : vector<1x256xi1> to vector<1x256xi1>
    %421 = vector.broadcast %420 : vector<1x256xi1> to vector<4x256xi1>
    %422 = vector.broadcast %cst_189 : f32 to vector<4x256xf32>
    %423 = arith.select %421, %400, %422 : vector<4x256xi1>, vector<4x256xf32>
    %c32_190 = arith.constant 32 : index
    %c0_191 = arith.constant 0 : index
    %424 = vector.load %arg5[%c32_190, %c0_191] : memref<48x256xf32, #tpu.memory_space<vmem>>, vector<4x256xf32>
    tpu.vector_store %arg5[%c32_190, %c0_191], %423 {strides = array<i32>} : memref<48x256xf32, #tpu.memory_space<vmem>>, vector<4x256xf32>,
    %c240_i32_192 = arith.constant 240 : i32
    %425 = tpu.dynamic_rotate %46 by %c240_i32_192 dim 1 : vector<4x256xf32>, i32 -> vector<4x256xf32>
    %c1_i32_193 = arith.constant 1 : i32
    %426 = vector.broadcast %c1_i32_193 : i32 to vector<1x256xi32>
    %427 = arith.addi %5, %426 : vector<1x256xi32>
    %c0_i32_194 = arith.constant 0 : i32
    %428 = vector.broadcast %c0_i32_194 : i32 to vector<1x256xi32>
    %429 = arith.cmpi sge, %427, %428 : vector<1x256xi32>
    %c1_i32_195 = arith.constant 1 : i32
    %430 = vector.broadcast %c1_i32_195 : i32 to vector<1x256xi32>
    %431 = arith.addi %5, %430 : vector<1x256xi32>
    %c15_i32_196 = arith.constant 15 : i32
    %432 = vector.broadcast %c15_i32_196 : i32 to vector<1x256xi32>
    %433 = arith.cmpi sle, %431, %432 : vector<1x256xi32>
    %434 = arith.andi %429, %433 : vector<1x256xi1>
    %c0_i32_197 = arith.constant 0 : i32
    %435 = vector.broadcast %c0_i32_197 : i32 to vector<1x256xi32>
    %436 = arith.addi %7, %435 : vector<1x256xi32>
    %c0_i32_198 = arith.constant 0 : i32
    %437 = vector.broadcast %c0_i32_198 : i32 to vector<1x256xi32>
    %438 = arith.cmpi sge, %436, %437 : vector<1x256xi32>
    %439 = arith.andi %434, %438 : vector<1x256xi1>
    %c0_i32_199 = arith.constant 0 : i32
    %440 = vector.broadcast %c0_i32_199 : i32 to vector<1x256xi32>
    %441 = arith.addi %7, %440 : vector<1x256xi32>
    %c15_i32_200 = arith.constant 15 : i32
    %442 = vector.broadcast %c15_i32_200 : i32 to vector<1x256xi32>
    %443 = arith.cmpi sle, %441, %442 : vector<1x256xi32>
    %444 = arith.andi %439, %443 : vector<1x256xi1>
    %cst_201 = arith.constant 0.000000e+00 : f32
    %445 = vector.shape_cast %444 : vector<1x256xi1> to vector<1x256xi1>
    %446 = vector.broadcast %445 : vector<1x256xi1> to vector<4x256xi1>
    %447 = vector.broadcast %cst_201 : f32 to vector<4x256xf32>
    %448 = arith.select %446, %425, %447 : vector<4x256xi1>, vector<4x256xf32>
    %c36_202 = arith.constant 36 : index
    %c0_203 = arith.constant 0 : index
    %449 = vector.load %arg5[%c36_202, %c0_203] : memref<48x256xf32, #tpu.memory_space<vmem>>, vector<4x256xf32>
    tpu.vector_store %arg5[%c36_202, %c0_203], %448 {strides = array<i32>} : memref<48x256xf32, #tpu.memory_space<vmem>>, vector<4x256xf32>,
    %c240_i32_204 = arith.constant 240 : i32
    %450 = tpu.dynamic_rotate %51 by %c240_i32_204 dim 1 : vector<4x256xf32>, i32 -> vector<4x256xf32>
    %c1_i32_205 = arith.constant 1 : i32
    %451 = vector.broadcast %c1_i32_205 : i32 to vector<1x256xi32>
    %452 = arith.addi %5, %451 : vector<1x256xi32>
    %c0_i32_206 = arith.constant 0 : i32
    %453 = vector.broadcast %c0_i32_206 : i32 to vector<1x256xi32>
    %454 = arith.cmpi sge, %452, %453 : vector<1x256xi32>
    %c1_i32_207 = arith.constant 1 : i32
    %455 = vector.broadcast %c1_i32_207 : i32 to vector<1x256xi32>
    %456 = arith.addi %5, %455 : vector<1x256xi32>
    %c15_i32_208 = arith.constant 15 : i32
    %457 = vector.broadcast %c15_i32_208 : i32 to vector<1x256xi32>
    %458 = arith.cmpi sle, %456, %457 : vector<1x256xi32>
    %459 = arith.andi %454, %458 : vector<1x256xi1>
    %c0_i32_209 = arith.constant 0 : i32
    %460 = vector.broadcast %c0_i32_209 : i32 to vector<1x256xi32>
    %461 = arith.addi %7, %460 : vector<1x256xi32>
    %c0_i32_210 = arith.constant 0 : i32
    %462 = vector.broadcast %c0_i32_210 : i32 to vector<1x256xi32>
    %463 = arith.cmpi sge, %461, %462 : vector<1x256xi32>
    %464 = arith.andi %459, %463 : vector<1x256xi1>
    %c0_i32_211 = arith.constant 0 : i32
    %465 = vector.broadcast %c0_i32_211 : i32 to vector<1x256xi32>
    %466 = arith.addi %7, %465 : vector<1x256xi32>
    %c15_i32_212 = arith.constant 15 : i32
    %467 = vector.broadcast %c15_i32_212 : i32 to vector<1x256xi32>
    %468 = arith.cmpi sle, %466, %467 : vector<1x256xi32>
    %469 = arith.andi %464, %468 : vector<1x256xi1>
    %cst_213 = arith.constant 0.000000e+00 : f32
    %470 = vector.shape_cast %469 : vector<1x256xi1> to vector<1x256xi1>
    %471 = vector.broadcast %470 : vector<1x256xi1> to vector<4x256xi1>
    %472 = vector.broadcast %cst_213 : f32 to vector<4x256xf32>
    %473 = arith.select %471, %450, %472 : vector<4x256xi1>, vector<4x256xf32>
    %c40_214 = arith.constant 40 : index
    %c0_215 = arith.constant 0 : index
    %474 = vector.load %arg5[%c40_214, %c0_215] : memref<48x256xf32, #tpu.memory_space<vmem>>, vector<4x256xf32>
    tpu.vector_store %arg5[%c40_214, %c0_215], %473 {strides = array<i32>} : memref<48x256xf32, #tpu.memory_space<vmem>>, vector<4x256xf32>,
    %c239_i32 = arith.constant 239 : i32
    %475 = tpu.dynamic_rotate %46 by %c239_i32 dim 1 : vector<4x256xf32>, i32 -> vector<4x256xf32>
    %c1_i32_216 = arith.constant 1 : i32
    %476 = vector.broadcast %c1_i32_216 : i32 to vector<1x256xi32>
    %477 = arith.addi %5, %476 : vector<1x256xi32>
    %c0_i32_217 = arith.constant 0 : i32
    %478 = vector.broadcast %c0_i32_217 : i32 to vector<1x256xi32>
    %479 = arith.cmpi sge, %477, %478 : vector<1x256xi32>
    %c1_i32_218 = arith.constant 1 : i32
    %480 = vector.broadcast %c1_i32_218 : i32 to vector<1x256xi32>
    %481 = arith.addi %5, %480 : vector<1x256xi32>
    %c15_i32_219 = arith.constant 15 : i32
    %482 = vector.broadcast %c15_i32_219 : i32 to vector<1x256xi32>
    %483 = arith.cmpi sle, %481, %482 : vector<1x256xi32>
    %484 = arith.andi %479, %483 : vector<1x256xi1>
    %c1_i32_220 = arith.constant 1 : i32
    %485 = vector.broadcast %c1_i32_220 : i32 to vector<1x256xi32>
    %486 = arith.addi %7, %485 : vector<1x256xi32>
    %c0_i32_221 = arith.constant 0 : i32
    %487 = vector.broadcast %c0_i32_221 : i32 to vector<1x256xi32>
    %488 = arith.cmpi sge, %486, %487 : vector<1x256xi32>
    %489 = arith.andi %484, %488 : vector<1x256xi1>
    %c1_i32_222 = arith.constant 1 : i32
    %490 = vector.broadcast %c1_i32_222 : i32 to vector<1x256xi32>
    %491 = arith.addi %7, %490 : vector<1x256xi32>
    %c15_i32_223 = arith.constant 15 : i32
    %492 = vector.broadcast %c15_i32_223 : i32 to vector<1x256xi32>
    %493 = arith.cmpi sle, %491, %492 : vector<1x256xi32>
    %494 = arith.andi %489, %493 : vector<1x256xi1>
    %cst_224 = arith.constant 0.000000e+00 : f32
    %495 = vector.shape_cast %494 : vector<1x256xi1> to vector<1x256xi1>
    %496 = vector.broadcast %495 : vector<1x256xi1> to vector<4x256xi1>
    %497 = vector.broadcast %cst_224 : f32 to vector<4x256xf32>
    %498 = arith.select %496, %475, %497 : vector<4x256xi1>, vector<4x256xf32>
    %c44_225 = arith.constant 44 : index
    %c0_226 = arith.constant 0 : index
    %499 = vector.load %arg5[%c44_225, %c0_226] : memref<48x256xf32, #tpu.memory_space<vmem>>, vector<4x256xf32>
    tpu.vector_store %arg5[%c44_225, %c0_226], %498 {strides = array<i32>} : memref<48x256xf32, #tpu.memory_space<vmem>>, vector<4x256xf32>,
    %c0_227 = arith.constant 0 : index
    %c0_228 = arith.constant 0 : index
    %500 = vector.load %arg5[%c0_227, %c0_228] : memref<48x256xf32, #tpu.memory_space<vmem>>, vector<48x256xf32>
    %501 = arith.truncf %500 : vector<48x256xf32> to vector<48x256xbf16>
    %cst_229 = arith.constant dense<0.000000e+00> : vector<16x256xf32>
    %502 = tpu.matmul %74, %501, %cst_229 {dimension_numbers = #tpu.dot_dimension_numbers<[1], [0], [0], [1], [0, 0, 1, 1], [], []>} : vector<16x48xbf16>, vector<48x256xbf16>, vector<16x256xf32> -> vector<16x256xf32>
    %503 = vector.broadcast %76 : vector<16x1xf32> to vector<16x256xf32>
    %504 = arith.addf %502, %503 : vector<16x256xf32>
    %cst_230 = arith.constant 0.000000e+00 : f32
    %505 = vector.broadcast %cst_230 : f32 to vector<16x256xf32>
    %506 = arith.cmpf ogt, %504, %505 : vector<16x256xf32>
    %507 = vector.broadcast %78 : vector<16x1xf32> to vector<16x256xf32>
    %508 = arith.mulf %507, %504 : vector<16x256xf32>
    %509 = arith.select %506, %504, %508 : vector<16x256xi1>, vector<16x256xf32>
    %c0_231 = arith.constant 0 : index
    %c1 = arith.constant 1 : index
    %c0_232 = arith.constant 0 : index
    %c0_233 = arith.constant 0 : index
    %510 = vector.load %arg4[%c0_231, %c1, %c0_232, %c0_233] : memref<1x2x16x256xf32, #tpu.memory_space<vmem>>, vector<1x1x16x256xf32>
    %511 = vector.shape_cast %510 : vector<1x1x16x256xf32> to vector<16x256xf32>
    %512 = vector.shape_cast %509 : vector<16x256xf32> to vector<1x1x16x256xf32>
    tpu.vector_store %arg4[%c0_231, %c1, %c0_232, %c0_233], %512 {strides = array<i32>} : memref<1x2x16x256xf32, #tpu.memory_space<vmem>>, vector<1x1x16x256xf32>,
    return
  }
  func.func @transform_0(%arg0: i32) -> (i32, i32, i32) {
    %c0_i32 = arith.constant 0 : i32
    %c0_i32_0 = arith.constant 0 : i32
    %c0_i32_1 = arith.constant 0 : i32
    return %arg0, %c0_i32, %c0_i32_0 : i32, i32, i32
  }
  func.func @transform_1(%arg0: i32) -> (i32, i32) {
    %c0_i32 = arith.constant 0 : i32
    %c0_i32_0 = arith.constant 0 : i32
    %c0_i32_1 = arith.constant 0 : i32
    return %c0_i32, %c0_i32_0 : i32, i32
  }
  func.func @transform_2(%arg0: i32) -> (i32, i32) {
    %c0_i32 = arith.constant 0 : i32
    %c0_i32_0 = arith.constant 0 : i32
    %c0_i32_1 = arith.constant 0 : i32
    return %c0_i32, %c0_i32_0 : i32, i32
  }
  func.func @transform_3(%arg0: i32) -> (i32, i32, i32, i32) {
    %c0_i32 = arith.constant 0 : i32
    %c0_i32_0 = arith.constant 0 : i32
    %c0_i32_1 = arith.constant 0 : i32
    %c0_i32_2 = arith.constant 0 : i32
    return %arg0, %c0_i32, %c0_i32_0, %c0_i32_1 : i32, i32, i32, i32
  }
}

</mosaic_0001>

<llo_original>
// kernel: tpu_custom_call.1
$region0: #{tpu_custom_call.1}
  #allocation0 [shape = 'u32[]', space=smem, size = 0x4, offset = 0x4, fixed_abs, tag = 'smem constant byte address 0x4 - core index']
  #allocation1 [shape = 'u32[144,128]{1,0:T(1,128)}', space=vmem, size = 0x12000, scoped, tag = 'internal scratch']
  #allocation2 [shape = 'f32[48,256]{1,0:T(8,128)}', space=vmem, size = 0xc000, scoped, tag = 'scratch operand']
  %s0 = inlined_call_operand.vmem [shape: bf16[2,4,256], index: 0, kind: input, shape index: {}]
  %s1 = inlined_call_operand.vmem [shape: bf16[16,48], index: 1, kind: input, shape index: {}]
  %s2 = inlined_call_operand.vmem [shape: f32[16,2], index: 2, kind: input, shape index: {}]
  %s3 = inlined_call_operand.hbm [shape: f32[2,2,16,256], index: 3, kind: output, shape index: {}]
  %s4 = sld [smem:[#allocation0]]
  $region45: #{tpu_custom_call.1} parent=0
    _
  %s6 = ssub.s32 1, %s4
  %s7 = scalar_select 0, %s6, %s4
  $region1: #{tpu_custom_call.1} parent=0
    #allocation3 [shape = 'u8[65536]{0}', space=vmem, size = 0x10000, scoped, tag = 'output window, operand 0']
    #allocation4 [shape = 's32[2]{0}', space=sflag, size = 0x8, scoped, tag = 'scoped memory for tpu_custom_call.1']
    %8 = vsyncpa [#allocation4], 0
    %s9 = scalar_lea.sflag [#allocation4], 1
    %10 = vsyncpa %s9, 0
    loop: start=0, step=1, limit=4
    $region2: #{tpu_custom_call.1} parent=1 // loop_pre_header
      _
    $region3: #{tpu_custom_call.1} parent=1 // loop_header
      %s12 = sphi 0, %s16
      %p13 = scmp.ge.s32.totalorder %s12, 4
      %s22 = sphi 0, %s24
      %s25 = sphi 0, %s22
      %s26 = sphi 0, %s25
      %s42 = sphi 0, %s26
      %s46 = sphi 0, %s46
      %s48 = sphi 0, %s46
      %s49 = sphi 0, %s48
      %s63 = sphi 0, %s49
      %s67 = sphi 0, %s67
      %s69 = sphi 0, %s67
      %s70 = sphi 0, %s69
      %s84 = sphi 0, %s70
      %s90 = sphi 0, %s92
      %s93 = sphi 0, %s90
      %s94 = sphi 0, %s93
      %s110 = sphi 0, %s94
    $region4: #{tpu_custom_call.1} parent=1 // loop_header_branch
      %15 = sbr.rel (%p13) target = $region8
    $region5: #{tpu_custom_call.1} parent=1 // loop_body
      %s17 = ssub.s32 %s12, 1
      %s18 = ssub.s32 %s12, 2
      %s19 = sadd.s32 %s12, 1
      %s20 = ssub.s32 %s12, %s19
      %p21 = scmp.eq.s32.totalorder %s20, 0
      %s23 = sadd.s32 %s22, 1
      %s24 = scalar_select %p21, %s22, %s23
      %p27 = pneg %p21
      %p28 = scmp.eq.s32.totalorder %s12, 1
      %p29 = por %p27, %p28
      %p30 = scmp.ne.s32.totalorder %s22, %s25
      %p31 = scmp.eq.s32.totalorder %s12, 0
      %p32 = por %p30, %p31
      %p33 = scmp.ne.s32.totalorder %s22, %s25
      %p34 = scmp.eq.s32.totalorder %s17, 1
      %p35 = por %p33, %p34
      %p36 = scmp.ne.s32.totalorder %s25, %s26
      %p37 = scmp.eq.s32.totalorder %s17, 0
      %p38 = por %p36, %p37
      %p39 = scmp.ne.s32.totalorder %s25, %s26
      %p40 = scmp.eq.s32.totalorder %s18, 1
      %p41 = por %p39, %p40
      %p43 = scmp.ne.s32.totalorder %s26, %s42
      %p44 = scmp.eq.s32.totalorder %s18, 0
      %p45 = por %p43, %p44
      %s47 = sadd.s32 %s46, 1
      %p50 = scmp.eq.s32.totalorder %s12, 1
      %p51 = scmp.ne.s32.totalorder %s46, %s48
      %p52 = scmp.eq.s32.totalorder %s12, 0
      %p53 = por %p51, %p52
      %p54 = scmp.ne.s32.totalorder %s46, %s48
      %p55 = scmp.eq.s32.totalorder %s17, 1
      %p56 = por %p54, %p55
      %p57 = scmp.ne.s32.totalorder %s48, %s49
      %p58 = scmp.eq.s32.totalorder %s17, 0
      %p59 = por %p57, %p58
      %p60 = scmp.ne.s32.totalorder %s48, %s49
      %p61 = scmp.eq.s32.totalorder %s18, 1
      %p62 = por %p60, %p61
      %p64 = scmp.ne.s32.totalorder %s49, %s63
      %p65 = scmp.eq.s32.totalorder %s18, 0
      %p66 = por %p64, %p65
      %s68 = sadd.s32 %s67, 1
      %p71 = scmp.eq.s32.totalorder %s12, 1
      %p72 = scmp.ne.s32.totalorder %s67, %s69
      %p73 = scmp.eq.s32.totalorder %s12, 0
      %p74 = por %p72, %p73
      %p75 = scmp.ne.s32.totalorder %s67, %s69
      %p76 = scmp.eq.s32.totalorder %s17, 1
      %p77 = por %p75, %p76
      %p78 = scmp.ne.s32.totalorder %s69, %s70
      %p79 = scmp.eq.s32.totalorder %s17, 0
      %p80 = por %p78, %p79
      %p81 = scmp.ne.s32.totalorder %s69, %s70
      %p82 = scmp.eq.s32.totalorder %s18, 1
      %p83 = por %p81, %p82
      %p85 = scmp.ne.s32.totalorder %s70, %s84
      %p86 = scmp.eq.s32.totalorder %s18, 0
      %p87 = por %p85, %p86
      %s88 = ssub.s32 %s12, %s19
      %p89 = scmp.eq.s32.totalorder %s88, 0
      %s91 = sadd.s32 %s90, 1
      %s92 = scalar_select %p89, %s90, %s91
      %p95 = pneg %p89
      %p96 = scmp.eq.s32.totalorder %s12, 1
      %p97 = por %p95, %p96
      %p98 = scmp.ne.s32.totalorder %s90, %s93
      %p99 = scmp.eq.s32.totalorder %s12, 0
      %p100 = por %p98, %p99
      %p101 = scmp.ne.s32.totalorder %s90, %s93
      %p102 = scmp.eq.s32.totalorder %s17, 1
      %p103 = por %p101, %p102
      %p104 = scmp.ne.s32.totalorder %s93, %s94
      %p105 = scmp.eq.s32.totalorder %s17, 0
      %p106 = por %p104, %p105
      %p107 = scmp.ne.s32.totalorder %s93, %s94
      %p108 = scmp.eq.s32.totalorder %s18, 1
      %p109 = por %p107, %p108
      %p111 = scmp.ne.s32.totalorder %s94, %s110
      %p112 = scmp.eq.s32.totalorder %s18, 0
      %p113 = por %p111, %p112
      %p114 = scmp.le.s32.totalorder 1, %s12
      %p115 = scmp.lt.s32.totalorder %s12, 3
      %p116 = pnand %p114, %p115
      %p117 = pneg %p116
      // Predicated region
      $region9: #{tpu_custom_call.1} parent=5 // pred_check
        _
      $region10: #{tpu_custom_call.1} parent=5 // pred_check_branch
        %119 = sbr.rel (%p116) target = $region12
      $region11: #{tpu_custom_call.1} parent=5 // pred_region
        %s120 = ssub.s32 %s12, 1
        // Predicated region
        $region13: #{tpu_custom_call.1} parent=11 // pred_check
          %p121 = pneg %p59
        $region14: #{tpu_custom_call.1} parent=11 // pred_check_branch
          %123 = sbr.rel (%p121) target = $region16
        $region15: #{tpu_custom_call.1} parent=11 // pred_region
          _
        $region16: #{tpu_custom_call.1} parent=11 // pred_fallthru
          _
        // Predicated region
        $region17: #{tpu_custom_call.1} parent=11 // pred_check
          %p124 = pneg %p80
        $region18: #{tpu_custom_call.1} parent=11 // pred_check_branch
          %126 = sbr.rel (%p124) target = $region20
        $region19: #{tpu_custom_call.1} parent=11 // pred_region
          _
        $region20: #{tpu_custom_call.1} parent=11 // pred_fallthru
          _
      $region12: #{tpu_custom_call.1} parent=5 // pred_fallthru
        _
      %p127 = scmp.lt.s32.totalorder %s12, 2
      // Predicated region
      $region21: #{tpu_custom_call.1} parent=5 // pred_check
        %p128 = pneg %p127
      $region22: #{tpu_custom_call.1} parent=5 // pred_check_branch
        %130 = sbr.rel (%p128) target = $region24
      $region23: #{tpu_custom_call.1} parent=5 // pred_region
        // Predicated region
        $region25: #{tpu_custom_call.1} parent=23 // pred_check
          %p131 = pneg %p32
        $region26: #{tpu_custom_call.1} parent=23 // pred_check_branch
          %133 = sbr.rel (%p131) target = $region28
        $region27: #{tpu_custom_call.1} parent=23 // pred_region
          %p134 = scmp.lt.s32.totalorder %s12, 1
          %s135 = scalar_select %p134, %s12, 1
          %s136 = smul.addr %s135, 2
          %s137 = smul.addr %s136, 2
          %s138 = scalar_lea.vmem %s0, %s137
        $region28: #{tpu_custom_call.1} parent=23 // pred_fallthru
          _
      $region24: #{tpu_custom_call.1} parent=5 // pred_fallthru
        _
      %p139 = scmp.le.s32.totalorder 1, %s12
      %p140 = scmp.lt.s32.totalorder %s12, 3
      %p141 = pnand %p139, %p140
      %p142 = pneg %p141
      // Predicated region
      $region29: #{tpu_custom_call.1} parent=5 // pred_check
        _
      $region30: #{tpu_custom_call.1} parent=5 // pred_check_branch
        %144 = sbr.rel (%p141) target = $region32
      $region31: #{tpu_custom_call.1} parent=5 // pred_region
        %s145 = ssub.s32 %s12, 1
        %p146 = scmp.lt.s32.totalorder %s17, 1
        %s147 = scalar_select %p146, %s17, 1
        %s148 = smul.addr %s147, 2
        %s149 = smul.addr %s148, 2
        %s150 = scalar_lea.vmem %s0, %s149
        %p151 = pneg %p38
        %p152 = pneg %p35
        %p153 = pneg %p59
        %p154 = pneg %p56
        %p155 = pneg %p80
        %p156 = pneg %p77
        %p157 = pneg %p106
        %p158 = pneg %p103
        %s159 = sand.u32 %s93, 1
        %s160 = scalar_lea.sflag [#allocation4], %s159
        %s161 = sand.u32 %s93, 1
        %s162 = smul.addr %s161, 64
        %s163 = scalar_lea.vmem [#allocation3], %s162
        %p164 = scmp.lt.s32.totalorder %s17, 1
        %s165 = scalar_select %p164, %s17, 1
        %s166 = smul.addr %s165, 2
        %s167 = smul.addr %s166, 2
        %s168 = scalar_lea.vmem %s0, %s167
        %v170 = vld [vmem:[%s168] sm:$0xf]
        %v171 = vunpack.c.l.bf16 %v170
        %v172 = vlaneseq
        %v173 = vand.u32 %v172, 127
        %v174 = vadd.s32 %v173, 128
        %v175 = vshra.s32 %v173, 4
        %v176 = vshra.s32 %v174, 4
        %v177 = vand.u32 %v173, 15
        %v178 = vand.u32 %v174, 15
        %vm179 = vcmp.eq.s32.totalorder %v175, 0
        %vm180 = vcmp.eq.s32.totalorder %v176, 0
        %v182 = vcombine.high %v171, %v171
        %184 = vrot.lane.b32.xlu0 %v171, 16
        %v185 = vpop.permute.xlu0 %184
        %186 = vrot.lane.b32.xlu0 %v182, 16
        %v187 = vpop.permute.xlu0 %186
        %vm188 = vcmp.lt.s32.totalorder %v173, 16
        %v189 = vsel %vm188, %v185, %v187
        %v190 = vsel %vm188, %v187, %v185
        %v191 = vsel %vm179, 1, 0
        %v192 = vsel %vm180, 1, 0
        %vm193 = vcmp.eq.s32.totalorder %v191, 1
        %vm194 = vcmp.eq.s32.totalorder %v192, 1
        %v195 = vsel %vm193, %v171, %v190
        %v196 = vsel %vm194, %v182, %v189
        %vm197 = vcmp.eq.s32.totalorder %v175, 15
        %vm198 = vcmp.eq.s32.totalorder %v176, 15
        %199 = vrot.lane.b32.xlu0 %v171, 112
        %v200 = vpop.permute.xlu0 %199
        %201 = vrot.lane.b32.xlu0 %v182, 112
        %v202 = vpop.permute.xlu0 %201
        %vm203 = vcmp.lt.s32.totalorder %v173, 112
        %v204 = vsel %vm203, %v200, %v202
        %v205 = vsel %vm203, %v202, %v200
        %v206 = vsel %vm197, 1, 0
        %v207 = vsel %vm198, 1, 0
        %vm208 = vcmp.eq.s32.totalorder %v206, 1
        %vm209 = vcmp.eq.s32.totalorder %v207, 1
        %v210 = vsel %vm208, %v171, %v204
        %v211 = vsel %vm209, %v182, %v205
        %v212 = vmul.f32 %v171, 0.75
        %v213 = vmul.f32 %v195, 0.25
        %v214 = vmul.f32 %v196, 0.25
        %v217 = vcombine.low %v213, %v214
        %v219 = vadd.f32 %v212, %v217
        %v220 = vmul.f32 %v210, 0.25
        %v221 = vmul.f32 %v211, 0.25
        %v224 = vcombine.low %v220, %v221
        %v226 = vadd.f32 %v212, %v224
        %vm227 = vcmp.eq.s32.totalorder %v177, 0
        %vm228 = vcmp.eq.s32.totalorder %v178, 0
        %v230 = vcombine.high %v219, %v219
        %232 = vrot.lane.b32.xlu0 %v219, 1
        %v233 = vpop.permute.xlu0 %232
        %234 = vrot.lane.b32.xlu0 %v230, 1
        %v235 = vpop.permute.xlu0 %234
        %vm236 = vcmp.lt.s32.totalorder %v173, 1
        %v237 = vsel %vm236, %v233, %v235
        %v238 = vsel %vm236, %v235, %v233
        %v239 = vsel %vm227, 1, 0
        %v240 = vsel %vm228, 1, 0
        %vm241 = vcmp.eq.s32.totalorder %v239, 1
        %vm242 = vcmp.eq.s32.totalorder %v240, 1
        %v243 = vsel %vm241, %v219, %v238
        %v244 = vsel %vm242, %v230, %v237
        %vm245 = vcmp.eq.s32.totalorder %v177, 15
        %vm246 = vcmp.eq.s32.totalorder %v178, 15
        %247 = vrot.lane.b32.xlu0 %v219, 127
        %v248 = vpop.permute.xlu0 %247
        %249 = vrot.lane.b32.xlu0 %v230, 127
        %v250 = vpop.permute.xlu0 %249
        %vm251 = vcmp.lt.s32.totalorder %v173, 127
        %v252 = vsel %vm251, %v248, %v250
        %v253 = vsel %vm251, %v250, %v248
        %v254 = vsel %vm245, 1, 0
        %v255 = vsel %vm246, 1, 0
        %vm256 = vcmp.eq.s32.totalorder %v254, 1
        %vm257 = vcmp.eq.s32.totalorder %v255, 1
        %v258 = vsel %vm256, %v219, %v252
        %v259 = vsel %vm257, %v230, %v253
        %v260 = vmul.f32 %v219, 0.75
        %v261 = vmul.f32 %v243, 0.25
        %v262 = vmul.f32 %v244, 0.25
        %v265 = vcombine.low %v261, %v262
        %v267 = vadd.f32 %v260, %v265
        %v268 = vmul.f32 %v258, 0.25
        %v269 = vmul.f32 %v259, 0.25
        %v272 = vcombine.low %v268, %v269
        %v274 = vadd.f32 %v260, %v272
        %v276 = vcombine.high %v226, %v226
        %278 = vrot.lane.b32.xlu0 %v226, 1
        %v279 = vpop.permute.xlu0 %278
        %280 = vrot.lane.b32.xlu0 %v276, 1
        %v281 = vpop.permute.xlu0 %280
        %v282 = vsel %vm236, %v279, %v281
        %v283 = vsel %vm236, %v281, %v279
        %v284 = vsel %vm241, %v226, %v283
        %v285 = vsel %vm242, %v276, %v282
        %286 = vrot.lane.b32.xlu0 %v226, 127
        %v287 = vpop.permute.xlu0 %286
        %288 = vrot.lane.b32.xlu0 %v276, 127
        %v289 = vpop.permute.xlu0 %288
        %v290 = vsel %vm251, %v287, %v289
        %v291 = vsel %vm251, %v289, %v287
        %v292 = vsel %vm256, %v226, %v290
        %v293 = vsel %vm257, %v276, %v291
        %v294 = vmul.f32 %v226, 0.75
        %v295 = vmul.f32 %v284, 0.25
        %v296 = vmul.f32 %v285, 0.25
        %v299 = vcombine.low %v295, %v296
        %v301 = vadd.f32 %v294, %v299
        %v302 = vmul.f32 %v292, 0.25
        %v303 = vmul.f32 %v293, 0.25
        %v306 = vcombine.low %v302, %v303
        %v308 = vadd.f32 %v294, %v306
        %v309 = vld [vmem:[%s1] sm:$0xf]
        %v310 = vld [vmem:[%s1 + $0x4] sm:$0xf]
        %v311 = vld [vmem:[%s2] sm:$0xff]
        %v312 = vld [vmem:[%s2 + $0x8] sm:$0xff]
        %v314 = vcombine.high %v308, %v308
        %316 = vrot.lane.b32.xlu0 %v308, 17
        %v317 = vpop.permute.xlu0 %316
        %318 = vrot.lane.b32.xlu0 %v314, 17
        %v319 = vpop.permute.xlu0 %318
        %vm320 = vcmp.lt.s32.totalorder %v173, 17
        %v321 = vsel %vm320, %v317, %v319
        %v322 = vsel %vm320, %v319, %v317
        %v323 = vadd.s32 %v175, 4294967295
        %v324 = vadd.s32 %v176, 4294967295
        %vm325 = vcmp.ge.s32.totalorder %v323, 0
        %vm326 = vcmp.ge.s32.totalorder %v324, 0
        %vm327 = vcmp.le.s32.totalorder %v323, 15
        %vm328 = vcmp.le.s32.totalorder %v324, 15
        %vm329 = vmand %vm325, %vm327
        %vm330 = vmand %vm326, %vm328
        %v331 = vadd.s32 %v177, 4294967295
        %v332 = vadd.s32 %v178, 4294967295
        %vm333 = vcmp.ge.s32.totalorder %v331, 0
        %vm334 = vcmp.ge.s32.totalorder %v332, 0
        %vm335 = vmand %vm329, %vm333
        %vm336 = vmand %vm330, %vm334
        %vm337 = vcmp.le.s32.totalorder %v331, 15
        %vm338 = vcmp.le.s32.totalorder %v332, 15
        %vm339 = vmand %vm335, %vm337
        %vm340 = vmand %vm336, %vm338
        %v341 = vsel %vm339, 1, 0
        %v342 = vsel %vm340, 1, 0
        %vm343 = vcmp.eq.s32.totalorder %v341, 1
        %vm344 = vcmp.eq.s32.totalorder %v342, 1
        %v345 = vsel %vm343, %v322, 0.0
        %v346 = vsel %vm344, %v321, 0.0
        %347 = vst [vmem:[#allocation2] sm:$0xf] %v345
        %348 = vst [vmem:[#allocation2 + $0x8] sm:$0xf] %v346
        %v350 = vcombine.high %v301, %v301
        %352 = vrot.lane.b32.xlu0 %v301, 16
        %v353 = vpop.permute.xlu0 %352
        %354 = vrot.lane.b32.xlu0 %v350, 16
        %v355 = vpop.permute.xlu0 %354
        %v356 = vsel %vm188, %v353, %v355
        %v357 = vsel %vm188, %v355, %v353
        %vm358 = vcmp.ge.s32.totalorder %v177, 0
        %vm359 = vcmp.ge.s32.totalorder %v178, 0
        %vm360 = vmand %vm329, %vm358
        %vm361 = vmand %vm330, %vm359
        %vm362 = vcmp.le.s32.totalorder %v177, 15
        %vm363 = vcmp.le.s32.totalorder %v178, 15
        %vm364 = vmand %vm360, %vm362
        %vm365 = vmand %vm361, %vm363
        %v366 = vsel %vm364, 1, 0
        %v367 = vsel %vm365, 1, 0
        %vm368 = vcmp.eq.s32.totalorder %v366, 1
        %vm369 = vcmp.eq.s32.totalorder %v367, 1
        %v370 = vsel %vm368, %v357, 0.0
        %v371 = vsel %vm369, %v356, 0.0
        %v374 = vrot.slane %v370, 4
        %v375 = vrot.slane %v371, 4
        %378 = vst [vmem:[#allocation2] sm:$0xf0] %v374
        %379 = vst [vmem:[#allocation2 + $0x8] sm:$0xf0] %v375
        %380 = vrot.lane.b32.xlu0 %v308, 16
        %v381 = vpop.permute.xlu0 %380
        %382 = vrot.lane.b32.xlu0 %v314, 16
        %v383 = vpop.permute.xlu0 %382
        %v384 = vsel %vm188, %v381, %v383
        %v385 = vsel %vm188, %v383, %v381
        %v386 = vsel %vm368, %v385, 0.0
        %v387 = vsel %vm369, %v384, 0.0
        %388 = vst [vmem:[#allocation2 + $0x10] sm:$0xf] %v386
        %389 = vst [vmem:[#allocation2 + $0x18] sm:$0xf] %v387
        %390 = vrot.lane.b32.xlu0 %v301, 15
        %v391 = vpop.permute.xlu0 %390
        %392 = vrot.lane.b32.xlu0 %v350, 15
        %v393 = vpop.permute.xlu0 %392
        %vm394 = vcmp.lt.s32.totalorder %v173, 15
        %v395 = vsel %vm394, %v391, %v393
        %v396 = vsel %vm394, %v393, %v391
        %v397 = vadd.s32 %v177, 1
        %v398 = vadd.s32 %v178, 1
        %vm399 = vcmp.ge.s32.totalorder %v397, 0
        %vm400 = vcmp.ge.s32.totalorder %v398, 0
        %vm401 = vmand %vm329, %vm399
        %vm402 = vmand %vm330, %vm400
        %vm403 = vcmp.le.s32.totalorder %v397, 15
        %vm404 = vcmp.le.s32.totalorder %v398, 15
        %vm405 = vmand %vm401, %vm403
        %vm406 = vmand %vm402, %vm404
        %v407 = vsel %vm405, 1, 0
        %v408 = vsel %vm406, 1, 0
        %vm409 = vcmp.eq.s32.totalorder %v407, 1
        %vm410 = vcmp.eq.s32.totalorder %v408, 1
        %v411 = vsel %vm409, %v396, 0.0
        %v412 = vsel %vm410, %v395, 0.0
        %v415 = vrot.slane %v411, 4
        %v416 = vrot.slane %v412, 4
        %419 = vst [vmem:[#allocation2 + $0x10] sm:$0xf0] %v415
        %420 = vst [vmem:[#allocation2 + $0x18] sm:$0xf0] %v416
        %v422 = vcombine.high %v274, %v274
        %424 = vrot.lane.b32.xlu0 %v274, 1
        %v425 = vpop.permute.xlu0 %424
        %426 = vrot.lane.b32.xlu0 %v422, 1
        %v427 = vpop.permute.xlu0 %426
        %v428 = vsel %vm236, %v425, %v427
        %v429 = vsel %vm236, %v427, %v425
        %vm430 = vcmp.ge.s32.totalorder %v175, 0
        %vm431 = vcmp.ge.s32.totalorder %v176, 0
        %vm432 = vcmp.le.s32.totalorder %v175, 15
        %vm433 = vcmp.le.s32.totalorder %v176, 15
        %vm434 = vmand %vm430, %vm432
        %vm435 = vmand %vm431, %vm433
        %vm436 = vmand %vm434, %vm333
        %vm437 = vmand %vm435, %vm334
        %vm438 = vmand %vm436, %vm337
        %vm439 = vmand %vm437, %vm338
        %v440 = vsel %vm438, 1, 0
        %v441 = vsel %vm439, 1, 0
        %vm442 = vcmp.eq.s32.totalorder %v440, 1
        %vm443 = vcmp.eq.s32.totalorder %v441, 1
        %v444 = vsel %vm442, %v429, 0.0
        %v445 = vsel %vm443, %v428, 0.0
        %446 = vst [vmem:[#allocation2 + $0x20] sm:$0xf] %v444
        %447 = vst [vmem:[#allocation2 + $0x28] sm:$0xf] %v445
        %v449 = vcombine.low %v267, %v267
        %451 = vst [vmem:[#allocation2 + $0x20] sm:$0xf0] %v449
        %452 = vst [vmem:[#allocation2 + $0x28] sm:$0xf0] %v267
        %453 = vst [vmem:[#allocation2 + $0x30] sm:$0xf] %v274
        %454 = vst [vmem:[#allocation2 + $0x38] sm:$0xf] %v422
        %v455 = vcombine.high %v267, %v267
        %457 = vrot.lane.b32.xlu0 %v267, 127
        %v458 = vpop.permute.xlu0 %457
        %459 = vrot.lane.b32.xlu0 %v455, 127
        %v460 = vpop.permute.xlu0 %459
        %v461 = vsel %vm251, %v458, %v460
        %v462 = vsel %vm251, %v460, %v458
        %vm463 = vmand %vm434, %vm399
        %vm464 = vmand %vm435, %vm400
        %vm465 = vmand %vm463, %vm403
        %vm466 = vmand %vm464, %vm404
        %v467 = vsel %vm465, 1, 0
        %v468 = vsel %vm466, 1, 0
        %vm469 = vcmp.eq.s32.totalorder %v467, 1
        %vm470 = vcmp.eq.s32.totalorder %v468, 1
        %v471 = vsel %vm469, %v461, 0.0
        %v472 = vsel %vm470, %v462, 0.0
        %v475 = vrot.slane %v471, 4
        %v476 = vrot.slane %v472, 4
        %479 = vst [vmem:[#allocation2 + $0x30] sm:$0xf0] %v475
        %480 = vst [vmem:[#allocation2 + $0x38] sm:$0xf0] %v476
        %481 = vrot.lane.b32.xlu0 %v308, 1
        %v482 = vpop.permute.xlu0 %481
        %483 = vrot.lane.b32.xlu0 %v314, 1
        %v484 = vpop.permute.xlu0 %483
        %v485 = vsel %vm236, %v482, %v484
        %v486 = vsel %vm236, %v484, %v482
        %v487 = vsel %vm442, %v486, 0.0
        %v488 = vsel %vm443, %v485, 0.0
        %489 = vst [vmem:[#allocation2 + $0x40] sm:$0xf] %v487
        %490 = vst [vmem:[#allocation2 + $0x48] sm:$0xf] %v488
        %v491 = vcombine.low %v301, %v301
        %493 = vst [vmem:[#allocation2 + $0x40] sm:$0xf0] %v491
        %494 = vst [vmem:[#allocation2 + $0x48] sm:$0xf0] %v301
        %495 = vst [vmem:[#allocation2 + $0x50] sm:$0xf] %v308
        %496 = vst [vmem:[#allocation2 + $0x58] sm:$0xf] %v314
        %497 = vrot.lane.b32.xlu0 %v301, 127
        %v498 = vpop.permute.xlu0 %497
        %499 = vrot.lane.b32.xlu0 %v350, 127
        %v500 = vpop.permute.xlu0 %499
        %v501 = vsel %vm251, %v498, %v500
        %v502 = vsel %vm251, %v500, %v498
        %v503 = vsel %vm469, %v501, 0.0
        %v504 = vsel %vm470, %v502, 0.0
        %v507 = vrot.slane %v503, 4
        %v508 = vrot.slane %v504, 4
        %511 = vst [vmem:[#allocation2 + $0x50] sm:$0xf0] %v507
        %512 = vst [vmem:[#allocation2 + $0x58] sm:$0xf0] %v508
        %v513 = vld [vmem:[#allocation2] sm:$0xff]
        %v514 = vld [vmem:[#allocation2 + $0x8] sm:$0xff]
        %v515 = vld [vmem:[#allocation2 + $0x10] sm:$0xff]
        %v516 = vld [vmem:[#allocation2 + $0x18] sm:$0xff]
        %v517 = vld [vmem:[#allocation2 + $0x20] sm:$0xff]
        %v518 = vld [vmem:[#allocation2 + $0x28] sm:$0xff]
        %v519 = vld [vmem:[#allocation2 + $0x30] sm:$0xff]
        %v520 = vld [vmem:[#allocation2 + $0x38] sm:$0xff]
        %v521 = vld [vmem:[#allocation2 + $0x40] sm:$0xff]
        %v522 = vld [vmem:[#allocation2 + $0x48] sm:$0xff]
        %v523 = vld [vmem:[#allocation2 + $0x50] sm:$0xff]
        %v524 = vld [vmem:[#allocation2 + $0x58] sm:$0xff]
        %v525 = vpack.c.bf16 %v515, %v513
        %v526 = vpack.c.bf16 %v516, %v514
        %v527 = vpack.c.bf16 %v519, %v517
        %v528 = vpack.c.bf16 %v520, %v518
        %v529 = vpack.c.bf16 %v523, %v521
        %v530 = vpack.c.bf16 %v524, %v522
        %532 = vset.pattern.permute.xlu0 0
        %533 = vperm.xlu0 %532, %v311
        %v534 = vpop.permute.xlu0 %533
        %537 = vset.pattern.permute.xlu0 0
        %538 = vperm.xlu0 %537, %v312
        %v539 = vpop.permute.xlu0 %538
        %v543 = vunpack.c.l.b16 %v309
        %v544 = vunpack.c.l.b16 %v310
        %v545 = vpack.c.b16 %v544, %v543
        %vm546 = vcmask 392192
        %v548 = vsel %vm546, %v545, 0
        %550 = vmatprep.subr.bf16.mxu0 0
        %551 = vmatpush1.bf16.msra.mxu0 0
        %552 = vmatprep.subr.bf16.mxu0 0
        %553 = vmatpush1.bf16.msra.mxu0 0
        %554 = vmatprep.subr.bf16.mxu0 0
        %555 = vmatpush1.bf16.msra.mxu0 0
        %556 = vmatprep.subr.bf16.mxu0 0
        %557 = vmatpush1.bf16.msra.mxu0 0
        %558 = vmatprep.subr.bf16.mxu0 0
        %559 = vmatpush1.bf16.msra.mxu0 0
        %560 = vmatprep.subr.bf16.mxu0 %v530
        %561 = vmatpush1.bf16.msra.mxu0 %v529
        %562 = vmatprep.subr.bf16.mxu0 %v528
        %563 = vmatpush1.bf16.msra.mxu0 %v527
        %564 = vmatprep.subr.bf16.mxu0 %v526
        %565 = vmatpush1.bf16.msra.mxu0 %v525
        %566 = vmatprep.subr.bf16.mxu0 0
        %567 = vmatpush2.bf16.msra.mxu0 0
        %568 = vmatprep.subr.bf16.mxu0 0
        %569 = vmatpush2.bf16.msra.mxu0 0
        %570 = vmatprep.subr.bf16.mxu0 0
        %571 = vmatpush2.bf16.msra.mxu0 0
        %572 = vmatprep.subr.bf16.mxu0 0
        %573 = vmatpush2.bf16.msra.mxu0 0
        %574 = vmatprep.subr.bf16.mxu0 0
        %575 = vmatpush2.bf16.msra.mxu0 0
        %576 = vmatprep.subr.bf16.mxu0 0
        %577 = vmatpush2.bf16.msra.mxu0 0
        %578 = vmatprep.subr.bf16.mxu0 0
        %579 = vmatpush2.bf16.msra.mxu0 0
        %580 = vmatprep.subr.bf16.mxu0 0
        %581 = vmatpush2.bf16.msra.mxu0 0
        %582 = vmatprep.mubr.bf16.mxu0 0
        %583 = vmatmul.mubr.bf16.gmra.mxu0 %v548
        %v584 = vpop.f32.mrf.mxu0
        %v585 = vadd.f32 %v534, %v584
        %v586 = vpop.f32.mrf.mxu0
        %v587 = vadd.f32 %v534, %v586
        %v588 = vpop.f32.mrf.mxu0
        %v589 = vadd.f32 %v539, %v588
        %v590 = vpop.f32.mrf.mxu0
        %v591 = vadd.f32 %v539, %v590
        %592 = vdwg.mxu0
        %vm593 = vcmp.gt.f32.partialorder %v585, 0.0
        %vm594 = vcmp.gt.f32.partialorder %v587, 0.0
        %vm595 = vcmp.gt.f32.partialorder %v589, 0.0
        %vm596 = vcmp.gt.f32.partialorder %v591, 0.0
        %597 = vset.pattern.permute.xlu0 1
        %598 = vperm.xlu0 %597, %v311
        %v599 = vpop.permute.xlu0 %598
        %601 = vset.pattern.permute.xlu0 1
        %602 = vperm.xlu0 %601, %v312
        %v603 = vpop.permute.xlu0 %602
        %v605 = vmul.f32 %v599, %v585
        %v606 = vmul.f32 %v599, %v587
        %v607 = vmul.f32 %v603, %v589
        %v608 = vmul.f32 %v603, %v591
        %v609 = vsel %vm593, %v585, %v605
        %v610 = vsel %vm594, %v587, %v606
        %v611 = vsel %vm595, %v589, %v607
        %v612 = vsel %vm596, %v591, %v608
        %613 = vst [vmem:[%s163] sm:$0xff] %v609
        %614 = vst [vmem:[%s163 + $0x8] sm:$0xff] %v610
        %615 = vst [vmem:[%s163 + $0x10] sm:$0xff] %v611
        %616 = vst [vmem:[%s163 + $0x18] sm:$0xff] %v612
        %617 = vst [vmem:[#allocation2] sm:$0xf] %v444
        %618 = vst [vmem:[#allocation2 + $0x8] sm:$0xf] %v445
        %619 = vst [vmem:[#allocation2] sm:$0xf0] %v449
        %620 = vst [vmem:[#allocation2 + $0x8] sm:$0xf0] %v267
        %621 = vst [vmem:[#allocation2 + $0x10] sm:$0xf] %v274
        %622 = vst [vmem:[#allocation2 + $0x18] sm:$0xf] %v422
        %623 = vst [vmem:[#allocation2 + $0x10] sm:$0xf0] %v475
        %624 = vst [vmem:[#allocation2 + $0x18] sm:$0xf0] %v476
        %625 = vst [vmem:[#allocation2 + $0x20] sm:$0xf] %v487
        %626 = vst [vmem:[#allocation2 + $0x28] sm:$0xf] %v488
        %627 = vst [vmem:[#allocation2 + $0x20] sm:$0xf0] %v491
        %628 = vst [vmem:[#allocation2 + $0x28] sm:$0xf0] %v301
        %629 = vst [vmem:[#allocation2 + $0x30] sm:$0xf] %v308
        %630 = vst [vmem:[#allocation2 + $0x38] sm:$0xf] %v314
        %631 = vst [vmem:[#allocation2 + $0x30] sm:$0xf0] %v507
        %632 = vst [vmem:[#allocation2 + $0x38] sm:$0xf0] %v508
        %633 = vrot.lane.b32.xlu0 %v274, 113
        %v634 = vpop.permute.xlu0 %633
        %635 = vrot.lane.b32.xlu0 %v422, 113
        %v636 = vpop.permute.xlu0 %635
        %vm637 = vcmp.lt.s32.totalorder %v173, 113
        %v638 = vsel %vm637, %v634, %v636
        %v639 = vsel %vm637, %v636, %v634
        %v640 = vadd.s32 %v175, 1
        %v641 = vadd.s32 %v176, 1
        %vm642 = vcmp.ge.s32.totalorder %v640, 0
        %vm643 = vcmp.ge.s32.totalorder %v641, 0
        %vm644 = vcmp.le.s32.totalorder %v640, 15
        %vm645 = vcmp.le.s32.totalorder %v641, 15
        %vm646 = vmand %vm642, %vm644
        %vm647 = vmand %vm643, %vm645
        %vm648 = vmand %vm646, %vm333
        %vm649 = vmand %vm647, %vm334
        %vm650 = vmand %vm648, %vm337
        %vm651 = vmand %vm649, %vm338
        %v652 = vsel %vm650, 1, 0
        %v653 = vsel %vm651, 1, 0
        %vm654 = vcmp.eq.s32.totalorder %v652, 1
        %vm655 = vcmp.eq.s32.totalorder %v653, 1
        %v656 = vsel %vm654, %v638, 0.0
        %v657 = vsel %vm655, %v639, 0.0
        %658 = vst [vmem:[#allocation2 + $0x40] sm:$0xf] %v656
        %659 = vst [vmem:[#allocation2 + $0x48] sm:$0xf] %v657
        %660 = vrot.lane.b32.xlu0 %v267, 112
        %v661 = vpop.permute.xlu0 %660
        %662 = vrot.lane.b32.xlu0 %v455, 112
        %v663 = vpop.permute.xlu0 %662
        %v664 = vsel %vm203, %v661, %v663
        %v665 = vsel %vm203, %v663, %v661
        %vm666 = vmand %vm646, %vm358
        %vm667 = vmand %vm647, %vm359
        %vm668 = vmand %vm666, %vm362
        %vm669 = vmand %vm667, %vm363
        %v670 = vsel %vm668, 1, 0
        %v671 = vsel %vm669, 1, 0
        %vm672 = vcmp.eq.s32.totalorder %v670, 1
        %vm673 = vcmp.eq.s32.totalorder %v671, 1
        %v674 = vsel %vm672, %v664, 0.0
        %v675 = vsel %vm673, %v665, 0.0
        %v678 = vrot.slane %v674, 4
        %v679 = vrot.slane %v675, 4
        %682 = vst [vmem:[#allocation2 + $0x40] sm:$0xf0] %v678
        %683 = vst [vmem:[#allocation2 + $0x48] sm:$0xf0] %v679
        %684 = vrot.lane.b32.xlu0 %v274, 112
        %v685 = vpop.permute.xlu0 %684
        %686 = vrot.lane.b32.xlu0 %v422, 112
        %v687 = vpop.permute.xlu0 %686
        %v688 = vsel %vm203, %v685, %v687
        %v689 = vsel %vm203, %v687, %v685
        %v690 = vsel %vm672, %v688, 0.0
        %v691 = vsel %vm673, %v689, 0.0
        %692 = vst [vmem:[#allocation2 + $0x50] sm:$0xf] %v690
        %693 = vst [vmem:[#allocation2 + $0x58] sm:$0xf] %v691
        %694 = vrot.lane.b32.xlu0 %v267, 111
        %v695 = vpop.permute.xlu0 %694
        %696 = vrot.lane.b32.xlu0 %v455, 111
        %v697 = vpop.permute.xlu0 %696
        %vm698 = vcmp.lt.s32.totalorder %v173, 111
        %v699 = vsel %vm698, %v695, %v697
        %v700 = vsel %vm698, %v697, %v695
        %vm701 = vmand %vm646, %vm399
        %vm702 = vmand %vm647, %vm400
        %vm703 = vmand %vm701, %vm403
        %vm704 = vmand %vm702, %vm404
        %v705 = vsel %vm703, 1, 0
        %v706 = vsel %vm704, 1, 0
        %vm707 = vcmp.eq.s32.totalorder %v705, 1
        %vm708 = vcmp.eq.s32.totalorder %v706, 1
        %v709 = vsel %vm707, %v699, 0.0
        %v710 = vsel %vm708, %v700, 0.0
        %v713 = vrot.slane %v709, 4
        %v714 = vrot.slane %v710, 4
        %717 = vst [vmem:[#allocation2 + $0x50] sm:$0xf0] %v713
        %718 = vst [vmem:[#allocation2 + $0x58] sm:$0xf0] %v714
        %v719 = vld [vmem:[#allocation2] sm:$0xff]
        %v720 = vld [vmem:[#allocation2 + $0x8] sm:$0xff]
        %v721 = vld [vmem:[#allocation2 + $0x10] sm:$0xff]
        %v722 = vld [vmem:[#allocation2 + $0x18] sm:$0xff]
        %v723 = vld [vmem:[#allocation2 + $0x20] sm:$0xff]
        %v724 = vld [vmem:[#allocation2 + $0x28] sm:$0xff]
        %v725 = vld [vmem:[#allocation2 + $0x30] sm:$0xff]
        %v726 = vld [vmem:[#allocation2 + $0x38] sm:$0xff]
        %v727 = vld [vmem:[#allocation2 + $0x40] sm:$0xff]
        %v728 = vld [vmem:[#allocation2 + $0x48] sm:$0xff]
        %v729 = vld [vmem:[#allocation2 + $0x50] sm:$0xff]
        %v730 = vld [vmem:[#allocation2 + $0x58] sm:$0xff]
        %v731 = vpack.c.bf16 %v721, %v719
        %v732 = vpack.c.bf16 %v722, %v720
        %v733 = vpack.c.bf16 %v725, %v723
        %v734 = vpack.c.bf16 %v726, %v724
        %v735 = vpack.c.bf16 %v729, %v727
        %v736 = vpack.c.bf16 %v730, %v728
        %737 = vmatprep.subr.bf16.mxu0 0
        %738 = vmatpush1.bf16.msra.mxu0 0
        %739 = vmatprep.subr.bf16.mxu0 0
        %740 = vmatpush1.bf16.msra.mxu0 0
        %741 = vmatprep.subr.bf16.mxu0 0
        %742 = vmatpush1.bf16.msra.mxu0 0
        %743 = vmatprep.subr.bf16.mxu0 0
        %744 = vmatpush1.bf16.msra.mxu0 0
        %745 = vmatprep.subr.bf16.mxu0 0
        %746 = vmatpush1.bf16.msra.mxu0 0
        %747 = vmatprep.subr.bf16.mxu0 %v736
        %748 = vmatpush1.bf16.msra.mxu0 %v735
        %749 = vmatprep.subr.bf16.mxu0 %v734
        %750 = vmatpush1.bf16.msra.mxu0 %v733
        %751 = vmatprep.subr.bf16.mxu0 %v732
        %752 = vmatpush1.bf16.msra.mxu0 %v731
        %753 = vmatprep.subr.bf16.mxu0 0
        %754 = vmatpush2.bf16.msra.mxu0 0
        %755 = vmatprep.subr.bf16.mxu0 0
        %756 = vmatpush2.bf16.msra.mxu0 0
        %757 = vmatprep.subr.bf16.mxu0 0
        %758 = vmatpush2.bf16.msra.mxu0 0
        %759 = vmatprep.subr.bf16.mxu0 0
        %760 = vmatpush2.bf16.msra.mxu0 0
        %761 = vmatprep.subr.bf16.mxu0 0
        %762 = vmatpush2.bf16.msra.mxu0 0
        %763 = vmatprep.subr.bf16.mxu0 0
        %764 = vmatpush2.bf16.msra.mxu0 0
        %765 = vmatprep.subr.bf16.mxu0 0
        %766 = vmatpush2.bf16.msra.mxu0 0
        %767 = vmatprep.subr.bf16.mxu0 0
        %768 = vmatpush2.bf16.msra.mxu0 0
        %769 = vmatprep.mubr.bf16.mxu0 0
        %770 = vmatmul.mubr.bf16.gmra.mxu0 %v548
        %v771 = vpop.f32.mrf.mxu0
        %v772 = vadd.f32 %v534, %v771
        %v773 = vpop.f32.mrf.mxu0
        %v774 = vadd.f32 %v534, %v773
        %v775 = vpop.f32.mrf.mxu0
        %v776 = vadd.f32 %v539, %v775
        %v777 = vpop.f32.mrf.mxu0
        %v778 = vadd.f32 %v539, %v777
        %779 = vdwg.mxu0
        %vm780 = vcmp.gt.f32.partialorder %v772, 0.0
        %vm781 = vcmp.gt.f32.partialorder %v774, 0.0
        %vm782 = vcmp.gt.f32.partialorder %v776, 0.0
        %vm783 = vcmp.gt.f32.partialorder %v778, 0.0
        %v784 = vmul.f32 %v599, %v772
        %v785 = vmul.f32 %v599, %v774
        %v786 = vmul.f32 %v603, %v776
        %v787 = vmul.f32 %v603, %v778
        %v788 = vsel %vm780, %v772, %v784
        %v789 = vsel %vm781, %v774, %v785
        %v790 = vsel %vm782, %v776, %v786
        %v791 = vsel %vm783, %v778, %v787
        %s792 = scalar_lea.vmem %s163, 32 [#allocation3]
        %793 = vst [vmem:[%s792] sm:$0xff] %v788
        %794 = vst [vmem:[%s792 + $0x8] sm:$0xff] %v789
        %795 = vst [vmem:[%s792 + $0x10] sm:$0xff] %v790
        %796 = vst [vmem:[%s792 + $0x18] sm:$0xff] %v791
        %s797 = sand.u32 %s93, 1
        %s798 = scalar_lea.sflag [#allocation4], %s797
        %s799 = sand.u32 %s93, 1
        %s800 = smul.addr %s799, 64
        %s801 = scalar_lea.vmem [#allocation3], %s800
        // Predicated region
        $region33: #{tpu_custom_call.1} parent=31 // pred_check
          %p802 = pneg %p103
        $region34: #{tpu_custom_call.1} parent=31 // pred_check_branch
          %804 = sbr.rel (%p802) target = $region36
        $region35: #{tpu_custom_call.1} parent=31 // pred_region
          %s806 = ssub.s32 1024, 1024
          %807 = vsyncadd %s798, %s806
          %s808 = smul.addr %s17, 8
          %s809 = smul.addr %s808, 128
          %s810 = scalar_lea.hbm %s3, %s809
          %s811 = sshll.u32 %s801, 4
          %s812 = int_to_ptr.vmem [resolvable:$true] %s811
          %817 = dma.vmem_to_hbm [thread:$0]  %s812, 1024, %s810, %s798, 256, 256, 16
        $region36: #{tpu_custom_call.1} parent=31 // pred_fallthru
          _
      $region32: #{tpu_custom_call.1} parent=5 // pred_fallthru
        _
      %p818 = scmp.le.s32.totalorder 2, %s12
      // Predicated region
      $region37: #{tpu_custom_call.1} parent=5 // pred_check
        %p819 = pneg %p818
      $region38: #{tpu_custom_call.1} parent=5 // pred_check_branch
        %821 = sbr.rel (%p819) target = $region40
      $region39: #{tpu_custom_call.1} parent=5 // pred_region
        %s822 = ssub.s32 %s12, 2
        // Predicated region
        $region41: #{tpu_custom_call.1} parent=39 // pred_check
          %p823 = pneg %p109
        $region42: #{tpu_custom_call.1} parent=39 // pred_check_branch
          %825 = sbr.rel (%p823) target = $region44
        $region43: #{tpu_custom_call.1} parent=39 // pred_region
          %s826 = sand.u32 %s94, 1
          %s827 = scalar_lea.sflag [#allocation4], %s826
          %s828 = sand.u32 %s94, 1
          %s829 = smul.addr %s828, 64
          %s830 = scalar_lea.vmem [#allocation3], %s829
          %831 = dma.done %s827, 1024
        $region44: #{tpu_custom_call.1} parent=39 // pred_fallthru
          _
      $region40: #{tpu_custom_call.1} parent=5 // pred_fallthru
        _
    $region6: #{tpu_custom_call.1} parent=1 // loop_footer
      %s16 = sadd.s32 1, %s12
    $region7: #{tpu_custom_call.1} parent=1 // loop_footer_branch
      %11 = sbr.rel target = $region3
    $region8: #{tpu_custom_call.1} parent=1 // loop_exit
      _
    %832 = vsyncpa [#allocation4], 1
    %s833 = scalar_lea.sflag [#allocation4], 1
    %834 = vsyncpa %s833, 1

</llo_original>
